<compile_context>
chip_gen: v5e
topology: v5e:2x2
jax: 0.10.0
libtpu: 0.0.40
codegen_flags: <defaults>
</compile_context>

<pallas_src>
import functools

import numpy as np

import jax
import jax.numpy as jnp
from jax import lax
from jax.experimental import pallas as pl
from jax.experimental.pallas import tpu as pltpu

_HW = 128  # width of each (lane-aligned) halo slab; must be >= 2*pad


def _round_up(a, b):
    return -(-a // b) * b


def _temporal_block_kernel(pad, ksize, tl, seq_len, nb, use_mxu, tail_mask,
                           x_ref, halo_ref, w1_ref, b1_ref, w2_ref, b2_ref, out_ref):
    # x_ref   : (nb, C, tl)        input tile (global cols [lt*tl, lt*tl+tl))
    # halo_ref: (nb, 1, C, 2*_HW)  left/right halo slabs (zeros outside [0, seq_len))
    # w*_ref  : (K, C, C)          per-tap weights (f32)
    # b*_ref  : (C, 1)             biases (f32)
    # out_ref : (nb, C, tl)        output tile
    C = x_ref.shape[1]
    w1v = tl + 2 * pad            # conv1 output width needed by conv2
    lt = pl.program_id(1)

    def conv(w_ref, b_ref, src, ofs, out_w):
        # relu(bias + sum_k W_k @ src[:, ofs+k : ofs+k+out_w]) with f32 accumulation.
        acc = jnp.zeros((C, out_w), jnp.float32)
        for k in range(ksize):                       # static unroll over taps
            seg = src[:, ofs + k: ofs + k + out_w]
            if use_mxu:
                acc = acc + jnp.dot(w_ref[k], seg,
                                    preferred_element_type=jnp.float32)
            else:
                # small-C path: K*C broadcast FMAs on the VPU, exact f32
                wk = w_ref[k]                        # (C_out, C_in)
                for ci in range(C):
                    acc = acc + wk[:, ci:ci + 1] * seg[ci:ci + 1, :]
        return jnp.maximum(acc + b_ref[...], 0.0)

    # conv2 must see conv1's output zero-padded at the *sequence* boundaries
    # (PyTorch padding=pad).  h1 column m <-> global column lt*tl - pad + m.
    g1 = lax.broadcasted_iota(jnp.int32, (C, w1v), 1) + (lt * tl - pad)
    h1_keep = (g1 >= 0) & (g1 < seq_len)
    if tail_mask:
        # last L tile extends past seq_len: the padded tail of the block holds
        # unspecified values -> zero it (conv1's zero padding at the right edge).
        gx = lax.broadcasted_iota(jnp.int32, (C, tl), 1) + lt * tl
        x_keep = gx < seq_len

    for b in range(nb):                              # static unroll over batch rows
        xt = x_ref[b].astype(jnp.float32)            # (C, tl)
        if tail_mask:
            xt = jnp.where(x_keep, xt, 0.0)

        # window = [left slab | tile | right slab]; all pieces are multiples of 128
        # lanes wide so the concat is tile-aligned.  Window col i <-> global col
        # lt*tl - _HW + i; the halo slabs already hold zeros outside [0, seq_len).
        win = jnp.concatenate(
            [halo_ref[b, 0, :, :_HW].astype(jnp.float32),
             xt,
             halo_ref[b, 0, :, _HW:].astype(jnp.float32)], axis=1)

        h1 = conv(w1_ref, b1_ref, win, _HW - 2 * pad, w1v)
        h1 = jnp.where(h1_keep, h1, 0.0)
        h2 = conv(w2_ref, b2_ref, h1, 0, tl)

        # residual add (f32), lane-dense full-width store (OOB tail is clipped)
        out_ref[b] = (xt + h2).astype(out_ref.dtype)


@functools.partial(jax.jit, static_argnames=("ksize",))
def temporal_block(x, w1, b1, w2, b2, *, ksize):
    """x: (N, C, L).  w*: (C_out, C_in, K) as in PyTorch Conv1d.  b*: (C,)."""
    N, C, L = x.shape
    if ksize % 2 != 1:
        # PyTorch pad=(ksize-1)//2 only preserves length for odd ksize.
        raise ValueError("TemporalBlock requires odd ksize to preserve the length.")
    pad = (ksize - 1) // 2
    halo = 2 * pad                 # columns needed on each side for conv1(conv2(.))
    if halo > _HW:
        raise ValueError("ksize too large for the 128-wide halo slabs.")

    # ---- C-aware, lane-dense tile: target ~2 MiB of f32 per x block per grid step ----
    target_elems = (2 * 1024 * 1024) // 4
    tl = max(128, ((target_elems // C) // 128) * 128)
    tl = min(tl, _round_up(L, 128))
    num_lt = pl.cdiv(L, tl)
    # Batch blocking to amortize per-step overhead when C*tl is small (capped to keep
    # the unrolled in-kernel batch loop modest).
    nb = int(min(N, max(1, target_elems // (C * tl)), 4))
    num_nb = pl.cdiv(N, nb)
    tail_mask = (num_lt * tl != L)
    use_mxu = C > 16               # small C: MXU <2% utilized -> pure VPU path

    # ---- tiny per-tile halo slabs (N, num_lt, C, 2*_HW): left slab ends at lane _HW,
    #      right slab starts at lane _HW; zeros outside [0, L).  This replaces the old
    #      full materialized overlapping-window copy of x in HBM. ----
    t0 = np.arange(num_lt, dtype=np.int64) * tl
    gidx = np.full((num_lt, 2 * _HW), -1, dtype=np.int64)
    if halo > 0:
        gidx[:, _HW - halo:_HW] = t0[:, None] + np.arange(-halo, 0)[None, :]
        gidx[:, _HW:_HW + halo] = t0[:, None] + tl + np.arange(halo)[None, :]
    valid = (gidx >= 0) & (gidx < L)
    gclip = np.clip(gidx, 0, L - 1).reshape(-1)
    halos = jnp.take(x, jnp.asarray(gclip, dtype=jnp.int32), axis=2)
    halos = jnp.where(jnp.asarray(valid.reshape(-1))[None, None, :], halos, 0)
    halos = halos.reshape(N, C, num_lt, 2 * _HW).transpose(0, 2, 1, 3)

    # Per-tap weights (K, C_out, C_in) and biases (C, 1), all f32 (accuracy: no bf16).
    w1_t = jnp.transpose(w1, (2, 0, 1)).astype(jnp.float32)
    w2_t = jnp.transpose(w2, (2, 0, 1)).astype(jnp.float32)
    b1_c = b1.reshape(C, 1).astype(jnp.float32)
    b2_c = b2.reshape(C, 1).astype(jnp.float32)

    kernel = functools.partial(_temporal_block_kernel, pad, ksize, tl, L, nb,
                               use_mxu, tail_mask)

    return pl.pallas_call(
        kernel,
        out_shape=jax.ShapeDtypeStruct((N, C, L), x.dtype),
        grid_spec=pltpu.PrefetchScalarGridSpec(
            num_scalar_prefetch=0,
            grid=(num_nb, num_lt),
            in_specs=[
                pl.BlockSpec((nb, C, tl), lambda b, t: (b, 0, t)),
                pl.BlockSpec((nb, 1, C, 2 * _HW), lambda b, t: (b, t, 0, 0)),
                pl.BlockSpec((ksize, C, C), lambda b, t: (0, 0, 0)),  # resident weights
                pl.BlockSpec((C, 1), lambda b, t: (0, 0)),
                pl.BlockSpec((ksize, C, C), lambda b, t: (0, 0, 0)),
                pl.BlockSpec((C, 1), lambda b, t: (0, 0)),
            ],
            out_specs=pl.BlockSpec((nb, C, tl), lambda b, t: (b, 0, t)),
        ),
        compiler_params=pltpu.CompilerParams(
            dimension_semantics=("parallel", "parallel"),
            vmem_limit_bytes=48 * 1024 * 1024,   # safe on v7x (64 MiB phys) and v5e/v6e
        ),
    )(x, halos, w1_t, b1_c, w2_t, b2_c)


def temporal_block_ref(x, w1, b1, w2, b2, *, ksize):
    """Pure-JAX f32 reference matching the PyTorch module semantics."""
    pad = (ksize - 1) // 2
    dn = ("NCH", "OIH", "NCH")
    prec = lax.Precision.HIGHEST
    h = lax.conv_general_dilated(x, w1, (1,), [(pad, pad)],
                                 dimension_numbers=dn, precision=prec)
    h = jnp.maximum(h + b1[None, :, None], 0.0)
    h = lax.conv_general_dilated(h, w2, (1,), [(pad, pad)],
                                 dimension_numbers=dn, precision=prec)
    h = jnp.maximum(h + b2[None, :, None], 0.0)
    return x + h


if __name__ == "__main__":
    N, C, L, K = 2, 8, 16, 3

    key = jax.random.PRNGKey(0)
    kx, k1, k2, k3, k4 = jax.random.split(key, 5)

    # deterministic synthetic params (shapes from nn.Conv1d(C, C, K))
    bound = 1.0 / (C * K) ** 0.5
    x = jax.random.normal(kx, (N, C, L), jnp.float32)
    w1 = jax.random.uniform(k1, (C, C, K), jnp.float32, -bound, bound)
    b1 = jax.random.uniform(k2, (C,), jnp.float32, -bound, bound)
    w2 = jax.random.uniform(k3, (C, C, K), jnp.float32, -bound, bound)
    b2 = jax.random.uniform(k4, (C,), jnp.float32, -bound, bound)

    out = jax.block_until_ready(temporal_block(x, w1, b1, w2, b2, ksize=K))
    ref = temporal_block_ref(x, w1, b1, w2, b2, ksize=K)

    assert out.shape == (N, C, L)
    err = float(jnp.max(jnp.abs(out - ref)))
    # f32 everywhere (small-C path runs entirely on the VPU), so the tolerance is tight
    assert jnp.allclose(out, ref, atol=1e-3, rtol=1e-3), err

    print("KERNEL_OK")
</pallas_src>

<mosaic_0001>
module attributes {stable_mosaic.version = 11 : i64} {
  func.func @_temporal_block_kernel(%arg0: i32, %arg1: i32, %arg2: memref<2x8x128xf32, #tpu.memory_space<vmem>>, %arg3: memref<2x1x8x256xf32, #tpu.memory_space<vmem>>, %arg4: memref<3x8x8xf32, #tpu.memory_space<vmem>>, %arg5: memref<8x1xf32, #tpu.memory_space<vmem>>, %arg6: memref<3x8x8xf32, #tpu.memory_space<vmem>>, %arg7: memref<8x1xf32, #tpu.memory_space<vmem>>, %arg8: memref<2x8x128xf32, #tpu.memory_space<vmem>>) attributes {dimension_semantics = [#tpu.dimension_semantics<parallel>, #tpu.dimension_semantics<parallel>], iteration_bounds = array<i64: 1, 1>, scalar_prefetch = 0 : i64, scratch_operands = 0 : i64, tpu.core_type = #tpu.core_type<tc>, window_params = [{transform_indices = @transform_0, window_bounds = array<i64: 2, 8, 128>}, {transform_indices = @transform_1, window_bounds = array<i64: 2, 1, 8, 256>}, {pipeline_mode = #tpu.pipeline_mode<synchronous>, transform_indices = @transform_2, window_bounds = array<i64: 3, 8, 8>}, {pipeline_mode = #tpu.pipeline_mode<synchronous>, transform_indices = @transform_3, window_bounds = array<i64: 8, 1>}, {pipeline_mode = #tpu.pipeline_mode<synchronous>, transform_indices = @transform_4, window_bounds = array<i64: 3, 8, 8>}, {pipeline_mode = #tpu.pipeline_mode<synchronous>, transform_indices = @transform_5, window_bounds = array<i64: 8, 1>}, {transform_indices = @transform_6, window_bounds = array<i64: 2, 8, 128>}]} {
    %0 = tpu.iota {dimensions = array<i32: 1>} : vector<8x130xi32>
    %c128_i32 = arith.constant 128 : i32
    %1 = arith.muli %arg1, %c128_i32 : i32
    %c1_i32 = arith.constant 1 : i32
    %2 = arith.subi %1, %c1_i32 : i32
    %3 = vector.broadcast %2 : i32 to vector<8x130xi32>
    %4 = arith.addi %0, %3 : vector<8x130xi32>
    %c0_i32 = arith.constant 0 : i32
    %5 = vector.broadcast %c0_i32 : i32 to vector<8x130xi32>
    %6 = arith.cmpi sge, %4, %5 : vector<8x130xi32>
    %c16_i32 = arith.constant 16 : i32
    %7 = vector.broadcast %c16_i32 : i32 to vector<8x130xi32>
    %8 = arith.cmpi slt, %4, %7 : vector<8x130xi32>
    %9 = arith.andi %6, %8 : vector<8x130xi1>
    %10 = tpu.iota {dimensions = array<i32: 1>} : vector<8x128xi32>
    %c128_i32_0 = arith.constant 128 : i32
    %11 = arith.muli %arg1, %c128_i32_0 : i32
    %12 = vector.broadcast %11 : i32 to vector<8x128xi32>
    %13 = arith.addi %10, %12 : vector<8x128xi32>
    %c16_i32_1 = arith.constant 16 : i32
    %14 = vector.broadcast %c16_i32_1 : i32 to vector<8x128xi32>
    %15 = arith.cmpi slt, %13, %14 : vector<8x128xi32>
    %c0 = arith.constant 0 : index
    %c0_2 = arith.constant 0 : index
    %c0_3 = arith.constant 0 : index
    %16 = vector.load %arg2[%c0, %c0_2, %c0_3] : memref<2x8x128xf32, #tpu.memory_space<vmem>>, vector<1x8x128xf32>
    %17 = vector.shape_cast %16 : vector<1x8x128xf32> to vector<8x128xf32>
    %cst = arith.constant 0.000000e+00 : f32
    %18 = vector.broadcast %cst : f32 to vector<8x128xf32>
    %19 = arith.select %15, %17, %18 : vector<8x128xi1>, vector<8x128xf32>
    %c0_4 = arith.constant 0 : index
    %c0_5 = arith.constant 0 : index
    %c0_6 = arith.constant 0 : index
    %c0_7 = arith.constant 0 : index
    %20 = vector.load %arg3[%c0_4, %c0_5, %c0_6, %c0_7] : memref<2x1x8x256xf32, #tpu.memory_space<vmem>>, vector<1x1x8x128xf32>
    %21 = vector.shape_cast %20 : vector<1x1x8x128xf32> to vector<8x128xf32>
    %c0_8 = arith.constant 0 : index
    %c0_9 = arith.constant 0 : index
    %c0_10 = arith.constant 0 : index
    %c128 = arith.constant 128 : index
    %22 = vector.load %arg3[%c0_8, %c0_9, %c0_10, %c128] : memref<2x1x8x256xf32, #tpu.memory_space<vmem>>, vector<1x1x8x128xf32>
    %23 = vector.shape_cast %22 : vector<1x1x8x128xf32> to vector<8x128xf32>
    %24 = tpu.concatenate %21, %19, %23 in 1 : vector<8x128xf32>, vector<8x128xf32>, vector<8x128xf32> -> vector<8x384xf32>
    %cst_11 = arith.constant 0.000000e+00 : f32
    %25 = vector.broadcast %cst_11 : f32 to vector<8x130xf32>
    %26 = vector.extract_strided_slice %24 {offsets = [0, 126], sizes = [8, 130], strides = [1, 1]} : vector<8x384xf32> to vector<8x130xf32>
    %c0_12 = arith.constant 0 : index
    %c0_13 = arith.constant 0 : index
    %c0_14 = arith.constant 0 : index
    %27 = vector.load %arg4[%c0_12, %c0_13, %c0_14] : memref<3x8x8xf32, #tpu.memory_space<vmem>>, vector<1x8x8xf32>
    %28 = vector.shape_cast %27 : vector<1x8x8xf32> to vector<8x8xf32>
    %29 = vector.extract_strided_slice %28 {offsets = [0, 0], sizes = [8, 1], strides = [1, 1]} : vector<8x8xf32> to vector<8x1xf32>
    %30 = vector.extract_strided_slice %26 {offsets = [0, 0], sizes = [1, 130], strides = [1, 1]} : vector<8x130xf32> to vector<1x130xf32>
    %31 = vector.broadcast %29 : vector<8x1xf32> to vector<8x130xf32>
    %32 = vector.broadcast %30 : vector<1x130xf32> to vector<8x130xf32>
    %33 = arith.mulf %31, %32 : vector<8x130xf32>
    %34 = arith.addf %25, %33 : vector<8x130xf32>
    %35 = vector.extract_strided_slice %28 {offsets = [0, 1], sizes = [8, 1], strides = [1, 1]} : vector<8x8xf32> to vector<8x1xf32>
    %36 = vector.extract_strided_slice %26 {offsets = [1, 0], sizes = [1, 130], strides = [1, 1]} : vector<8x130xf32> to vector<1x130xf32>
    %37 = vector.broadcast %35 : vector<8x1xf32> to vector<8x130xf32>
    %38 = vector.broadcast %36 : vector<1x130xf32> to vector<8x130xf32>
    %39 = arith.mulf %37, %38 : vector<8x130xf32>
    %40 = arith.addf %34, %39 : vector<8x130xf32>
    %41 = vector.extract_strided_slice %28 {offsets = [0, 2], sizes = [8, 1], strides = [1, 1]} : vector<8x8xf32> to vector<8x1xf32>
    %42 = vector.extract_strided_slice %26 {offsets = [2, 0], sizes = [1, 130], strides = [1, 1]} : vector<8x130xf32> to vector<1x130xf32>
    %43 = vector.broadcast %41 : vector<8x1xf32> to vector<8x130xf32>
    %44 = vector.broadcast %42 : vector<1x130xf32> to vector<8x130xf32>
    %45 = arith.mulf %43, %44 : vector<8x130xf32>
    %46 = arith.addf %40, %45 : vector<8x130xf32>
    %47 = vector.extract_strided_slice %28 {offsets = [0, 3], sizes = [8, 1], strides = [1, 1]} : vector<8x8xf32> to vector<8x1xf32>
    %48 = vector.extract_strided_slice %26 {offsets = [3, 0], sizes = [1, 130], strides = [1, 1]} : vector<8x130xf32> to vector<1x130xf32>
    %49 = vector.broadcast %47 : vector<8x1xf32> to vector<8x130xf32>
    %50 = vector.broadcast %48 : vector<1x130xf32> to vector<8x130xf32>
    %51 = arith.mulf %49, %50 : vector<8x130xf32>
    %52 = arith.addf %46, %51 : vector<8x130xf32>
    %53 = vector.extract_strided_slice %28 {offsets = [0, 4], sizes = [8, 1], strides = [1, 1]} : vector<8x8xf32> to vector<8x1xf32>
    %54 = vector.extract_strided_slice %26 {offsets = [4, 0], sizes = [1, 130], strides = [1, 1]} : vector<8x130xf32> to vector<1x130xf32>
    %55 = vector.broadcast %53 : vector<8x1xf32> to vector<8x130xf32>
    %56 = vector.broadcast %54 : vector<1x130xf32> to vector<8x130xf32>
    %57 = arith.mulf %55, %56 : vector<8x130xf32>
    %58 = arith.addf %52, %57 : vector<8x130xf32>
    %59 = vector.extract_strided_slice %28 {offsets = [0, 5], sizes = [8, 1], strides = [1, 1]} : vector<8x8xf32> to vector<8x1xf32>
    %60 = vector.extract_strided_slice %26 {offsets = [5, 0], sizes = [1, 130], strides = [1, 1]} : vector<8x130xf32> to vector<1x130xf32>
    %61 = vector.broadcast %59 : vector<8x1xf32> to vector<8x130xf32>
    %62 = vector.broadcast %60 : vector<1x130xf32> to vector<8x130xf32>
    %63 = arith.mulf %61, %62 : vector<8x130xf32>
    %64 = arith.addf %58, %63 : vector<8x130xf32>
    %65 = vector.extract_strided_slice %28 {offsets = [0, 6], sizes = [8, 1], strides = [1, 1]} : vector<8x8xf32> to vector<8x1xf32>
    %66 = vector.extract_strided_slice %26 {offsets = [6, 0], sizes = [1, 130], strides = [1, 1]} : vector<8x130xf32> to vector<1x130xf32>
    %67 = vector.broadcast %65 : vector<8x1xf32> to vector<8x130xf32>
    %68 = vector.broadcast %66 : vector<1x130xf32> to vector<8x130xf32>
    %69 = arith.mulf %67, %68 : vector<8x130xf32>
    %70 = arith.addf %64, %69 : vector<8x130xf32>
    %71 = vector.extract_strided_slice %28 {offsets = [0, 7], sizes = [8, 1], strides = [1, 1]} : vector<8x8xf32> to vector<8x1xf32>
    %72 = vector.extract_strided_slice %26 {offsets = [7, 0], sizes = [1, 130], strides = [1, 1]} : vector<8x130xf32> to vector<1x130xf32>
    %73 = vector.broadcast %71 : vector<8x1xf32> to vector<8x130xf32>
    %74 = vector.broadcast %72 : vector<1x130xf32> to vector<8x130xf32>
    %75 = arith.mulf %73, %74 : vector<8x130xf32>
    %76 = arith.addf %70, %75 : vector<8x130xf32>
    %77 = vector.extract_strided_slice %24 {offsets = [0, 127], sizes = [8, 130], strides = [1, 1]} : vector<8x384xf32> to vector<8x130xf32>
    %c1 = arith.constant 1 : index
    %c0_15 = arith.constant 0 : index
    %c0_16 = arith.constant 0 : index
    %78 = vector.load %arg4[%c1, %c0_15, %c0_16] : memref<3x8x8xf32, #tpu.memory_space<vmem>>, vector<1x8x8xf32>
    %79 = vector.shape_cast %78 : vector<1x8x8xf32> to vector<8x8xf32>
    %80 = vector.extract_strided_slice %79 {offsets = [0, 0], sizes = [8, 1], strides = [1, 1]} : vector<8x8xf32> to vector<8x1xf32>
    %81 = vector.extract_strided_slice %77 {offsets = [0, 0], sizes = [1, 130], strides = [1, 1]} : vector<8x130xf32> to vector<1x130xf32>
    %82 = vector.broadcast %80 : vector<8x1xf32> to vector<8x130xf32>
    %83 = vector.broadcast %81 : vector<1x130xf32> to vector<8x130xf32>
    %84 = arith.mulf %82, %83 : vector<8x130xf32>
    %85 = arith.addf %76, %84 : vector<8x130xf32>
    %86 = vector.extract_strided_slice %79 {offsets = [0, 1], sizes = [8, 1], strides = [1, 1]} : vector<8x8xf32> to vector<8x1xf32>
    %87 = vector.extract_strided_slice %77 {offsets = [1, 0], sizes = [1, 130], strides = [1, 1]} : vector<8x130xf32> to vector<1x130xf32>
    %88 = vector.broadcast %86 : vector<8x1xf32> to vector<8x130xf32>
    %89 = vector.broadcast %87 : vector<1x130xf32> to vector<8x130xf32>
    %90 = arith.mulf %88, %89 : vector<8x130xf32>
    %91 = arith.addf %85, %90 : vector<8x130xf32>
    %92 = vector.extract_strided_slice %79 {offsets = [0, 2], sizes = [8, 1], strides = [1, 1]} : vector<8x8xf32> to vector<8x1xf32>
    %93 = vector.extract_strided_slice %77 {offsets = [2, 0], sizes = [1, 130], strides = [1, 1]} : vector<8x130xf32> to vector<1x130xf32>
    %94 = vector.broadcast %92 : vector<8x1xf32> to vector<8x130xf32>
    %95 = vector.broadcast %93 : vector<1x130xf32> to vector<8x130xf32>
    %96 = arith.mulf %94, %95 : vector<8x130xf32>
    %97 = arith.addf %91, %96 : vector<8x130xf32>
    %98 = vector.extract_strided_slice %79 {offsets = [0, 3], sizes = [8, 1], strides = [1, 1]} : vector<8x8xf32> to vector<8x1xf32>
    %99 = vector.extract_strided_slice %77 {offsets = [3, 0], sizes = [1, 130], strides = [1, 1]} : vector<8x130xf32> to vector<1x130xf32>
    %100 = vector.broadcast %98 : vector<8x1xf32> to vector<8x130xf32>
    %101 = vector.broadcast %99 : vector<1x130xf32> to vector<8x130xf32>
    %102 = arith.mulf %100, %101 : vector<8x130xf32>
    %103 = arith.addf %97, %102 : vector<8x130xf32>
    %104 = vector.extract_strided_slice %79 {offsets = [0, 4], sizes = [8, 1], strides = [1, 1]} : vector<8x8xf32> to vector<8x1xf32>
    %105 = vector.extract_strided_slice %77 {offsets = [4, 0], sizes = [1, 130], strides = [1, 1]} : vector<8x130xf32> to vector<1x130xf32>
    %106 = vector.broadcast %104 : vector<8x1xf32> to vector<8x130xf32>
    %107 = vector.broadcast %105 : vector<1x130xf32> to vector<8x130xf32>
    %108 = arith.mulf %106, %107 : vector<8x130xf32>
    %109 = arith.addf %103, %108 : vector<8x130xf32>
    %110 = vector.extract_strided_slice %79 {offsets = [0, 5], sizes = [8, 1], strides = [1, 1]} : vector<8x8xf32> to vector<8x1xf32>
    %111 = vector.extract_strided_slice %77 {offsets = [5, 0], sizes = [1, 130], strides = [1, 1]} : vector<8x130xf32> to vector<1x130xf32>
    %112 = vector.broadcast %110 : vector<8x1xf32> to vector<8x130xf32>
    %113 = vector.broadcast %111 : vector<1x130xf32> to vector<8x130xf32>
    %114 = arith.mulf %112, %113 : vector<8x130xf32>
    %115 = arith.addf %109, %114 : vector<8x130xf32>
    %116 = vector.extract_strided_slice %79 {offsets = [0, 6], sizes = [8, 1], strides = [1, 1]} : vector<8x8xf32> to vector<8x1xf32>
    %117 = vector.extract_strided_slice %77 {offsets = [6, 0], sizes = [1, 130], strides = [1, 1]} : vector<8x130xf32> to vector<1x130xf32>
    %118 = vector.broadcast %116 : vector<8x1xf32> to vector<8x130xf32>
    %119 = vector.broadcast %117 : vector<1x130xf32> to vector<8x130xf32>
    %120 = arith.mulf %118, %119 : vector<8x130xf32>
    %121 = arith.addf %115, %120 : vector<8x130xf32>
    %122 = vector.extract_strided_slice %79 {offsets = [0, 7], sizes = [8, 1], strides = [1, 1]} : vector<8x8xf32> to vector<8x1xf32>
    %123 = vector.extract_strided_slice %77 {offsets = [7, 0], sizes = [1, 130], strides = [1, 1]} : vector<8x130xf32> to vector<1x130xf32>
    %124 = vector.broadcast %122 : vector<8x1xf32> to vector<8x130xf32>
    %125 = vector.broadcast %123 : vector<1x130xf32> to vector<8x130xf32>
    %126 = arith.mulf %124, %125 : vector<8x130xf32>
    %127 = arith.addf %121, %126 : vector<8x130xf32>
    %128 = vector.extract_strided_slice %24 {offsets = [0, 128], sizes = [8, 130], strides = [1, 1]} : vector<8x384xf32> to vector<8x130xf32>
    %c2 = arith.constant 2 : index
    %c0_17 = arith.constant 0 : index
    %c0_18 = arith.constant 0 : index
    %129 = vector.load %arg4[%c2, %c0_17, %c0_18] : memref<3x8x8xf32, #tpu.memory_space<vmem>>, vector<1x8x8xf32>
    %130 = vector.shape_cast %129 : vector<1x8x8xf32> to vector<8x8xf32>
    %131 = vector.extract_strided_slice %130 {offsets = [0, 0], sizes = [8, 1], strides = [1, 1]} : vector<8x8xf32> to vector<8x1xf32>
    %132 = vector.extract_strided_slice %128 {offsets = [0, 0], sizes = [1, 130], strides = [1, 1]} : vector<8x130xf32> to vector<1x130xf32>
    %133 = vector.broadcast %131 : vector<8x1xf32> to vector<8x130xf32>
    %134 = vector.broadcast %132 : vector<1x130xf32> to vector<8x130xf32>
    %135 = arith.mulf %133, %134 : vector<8x130xf32>
    %136 = arith.addf %127, %135 : vector<8x130xf32>
    %137 = vector.extract_strided_slice %130 {offsets = [0, 1], sizes = [8, 1], strides = [1, 1]} : vector<8x8xf32> to vector<8x1xf32>
    %138 = vector.extract_strided_slice %128 {offsets = [1, 0], sizes = [1, 130], strides = [1, 1]} : vector<8x130xf32> to vector<1x130xf32>
    %139 = vector.broadcast %137 : vector<8x1xf32> to vector<8x130xf32>
    %140 = vector.broadcast %138 : vector<1x130xf32> to vector<8x130xf32>
    %141 = arith.mulf %139, %140 : vector<8x130xf32>
    %142 = arith.addf %136, %141 : vector<8x130xf32>
    %143 = vector.extract_strided_slice %130 {offsets = [0, 2], sizes = [8, 1], strides = [1, 1]} : vector<8x8xf32> to vector<8x1xf32>
    %144 = vector.extract_strided_slice %128 {offsets = [2, 0], sizes = [1, 130], strides = [1, 1]} : vector<8x130xf32> to vector<1x130xf32>
    %145 = vector.broadcast %143 : vector<8x1xf32> to vector<8x130xf32>
    %146 = vector.broadcast %144 : vector<1x130xf32> to vector<8x130xf32>
    %147 = arith.mulf %145, %146 : vector<8x130xf32>
    %148 = arith.addf %142, %147 : vector<8x130xf32>
    %149 = vector.extract_strided_slice %130 {offsets = [0, 3], sizes = [8, 1], strides = [1, 1]} : vector<8x8xf32> to vector<8x1xf32>
    %150 = vector.extract_strided_slice %128 {offsets = [3, 0], sizes = [1, 130], strides = [1, 1]} : vector<8x130xf32> to vector<1x130xf32>
    %151 = vector.broadcast %149 : vector<8x1xf32> to vector<8x130xf32>
    %152 = vector.broadcast %150 : vector<1x130xf32> to vector<8x130xf32>
    %153 = arith.mulf %151, %152 : vector<8x130xf32>
    %154 = arith.addf %148, %153 : vector<8x130xf32>
    %155 = vector.extract_strided_slice %130 {offsets = [0, 4], sizes = [8, 1], strides = [1, 1]} : vector<8x8xf32> to vector<8x1xf32>
    %156 = vector.extract_strided_slice %128 {offsets = [4, 0], sizes = [1, 130], strides = [1, 1]} : vector<8x130xf32> to vector<1x130xf32>
    %157 = vector.broadcast %155 : vector<8x1xf32> to vector<8x130xf32>
    %158 = vector.broadcast %156 : vector<1x130xf32> to vector<8x130xf32>
    %159 = arith.mulf %157, %158 : vector<8x130xf32>
    %160 = arith.addf %154, %159 : vector<8x130xf32>
    %161 = vector.extract_strided_slice %130 {offsets = [0, 5], sizes = [8, 1], strides = [1, 1]} : vector<8x8xf32> to vector<8x1xf32>
    %162 = vector.extract_strided_slice %128 {offsets = [5, 0], sizes = [1, 130], strides = [1, 1]} : vector<8x130xf32> to vector<1x130xf32>
    %163 = vector.broadcast %161 : vector<8x1xf32> to vector<8x130xf32>
    %164 = vector.broadcast %162 : vector<1x130xf32> to vector<8x130xf32>
    %165 = arith.mulf %163, %164 : vector<8x130xf32>
    %166 = arith.addf %160, %165 : vector<8x130xf32>
    %167 = vector.extract_strided_slice %130 {offsets = [0, 6], sizes = [8, 1], strides = [1, 1]} : vector<8x8xf32> to vector<8x1xf32>
    %168 = vector.extract_strided_slice %128 {offsets = [6, 0], sizes = [1, 130], strides = [1, 1]} : vector<8x130xf32> to vector<1x130xf32>
    %169 = vector.broadcast %167 : vector<8x1xf32> to vector<8x130xf32>
    %170 = vector.broadcast %168 : vector<1x130xf32> to vector<8x130xf32>
    %171 = arith.mulf %169, %170 : vector<8x130xf32>
    %172 = arith.addf %166, %171 : vector<8x130xf32>
    %173 = vector.extract_strided_slice %130 {offsets = [0, 7], sizes = [8, 1], strides = [1, 1]} : vector<8x8xf32> to vector<8x1xf32>
    %174 = vector.extract_strided_slice %128 {offsets = [7, 0], sizes = [1, 130], strides = [1, 1]} : vector<8x130xf32> to vector<1x130xf32>
    %175 = vector.broadcast %173 : vector<8x1xf32> to vector<8x130xf32>
    %176 = vector.broadcast %174 : vector<1x130xf32> to vector<8x130xf32>
    %177 = arith.mulf %175, %176 : vector<8x130xf32>
    %178 = arith.addf %172, %177 : vector<8x130xf32>
    %c0_19 = arith.constant 0 : index
    %c0_20 = arith.constant 0 : index
    %179 = vector.load %arg5[%c0_19, %c0_20] : memref<8x1xf32, #tpu.memory_space<vmem>>, vector<8x1xf32>
    %180 = vector.broadcast %179 : vector<8x1xf32> to vector<8x130xf32>
    %181 = arith.addf %178, %180 : vector<8x130xf32>
    %cst_21 = arith.constant 0.000000e+00 : f32
    %182 = vector.broadcast %cst_21 : f32 to vector<8x130xf32>
    %183 = arith.maximumf %181, %182 : vector<8x130xf32>
    %cst_22 = arith.constant 0.000000e+00 : f32
    %184 = vector.broadcast %cst_22 : f32 to vector<8x130xf32>
    %185 = arith.select %9, %183, %184 : vector<8x130xi1>, vector<8x130xf32>
    %cst_23 = arith.constant 0.000000e+00 : f32
    %186 = vector.broadcast %cst_23 : f32 to vector<8x128xf32>
    %187 = vector.extract_strided_slice %185 {offsets = [0, 0], sizes = [8, 128], strides = [1, 1]} : vector<8x130xf32> to vector<8x128xf32>
    %c0_24 = arith.constant 0 : index
    %c0_25 = arith.constant 0 : index
    %c0_26 = arith.constant 0 : index
    %188 = vector.load %arg6[%c0_24, %c0_25, %c0_26] : memref<3x8x8xf32, #tpu.memory_space<vmem>>, vector<1x8x8xf32>
    %189 = vector.shape_cast %188 : vector<1x8x8xf32> to vector<8x8xf32>
    %190 = vector.extract_strided_slice %189 {offsets = [0, 0], sizes = [8, 1], strides = [1, 1]} : vector<8x8xf32> to vector<8x1xf32>
    %191 = vector.extract_strided_slice %187 {offsets = [0, 0], sizes = [1, 128], strides = [1, 1]} : vector<8x128xf32> to vector<1x128xf32>
    %192 = vector.broadcast %190 : vector<8x1xf32> to vector<8x128xf32>
    %193 = vector.broadcast %191 : vector<1x128xf32> to vector<8x128xf32>
    %194 = arith.mulf %192, %193 : vector<8x128xf32>
    %195 = arith.addf %186, %194 : vector<8x128xf32>
    %196 = vector.extract_strided_slice %189 {offsets = [0, 1], sizes = [8, 1], strides = [1, 1]} : vector<8x8xf32> to vector<8x1xf32>
    %197 = vector.extract_strided_slice %187 {offsets = [1, 0], sizes = [1, 128], strides = [1, 1]} : vector<8x128xf32> to vector<1x128xf32>
    %198 = vector.broadcast %196 : vector<8x1xf32> to vector<8x128xf32>
    %199 = vector.broadcast %197 : vector<1x128xf32> to vector<8x128xf32>
    %200 = arith.mulf %198, %199 : vector<8x128xf32>
    %201 = arith.addf %195, %200 : vector<8x128xf32>
    %202 = vector.extract_strided_slice %189 {offsets = [0, 2], sizes = [8, 1], strides = [1, 1]} : vector<8x8xf32> to vector<8x1xf32>
    %203 = vector.extract_strided_slice %187 {offsets = [2, 0], sizes = [1, 128], strides = [1, 1]} : vector<8x128xf32> to vector<1x128xf32>
    %204 = vector.broadcast %202 : vector<8x1xf32> to vector<8x128xf32>
    %205 = vector.broadcast %203 : vector<1x128xf32> to vector<8x128xf32>
    %206 = arith.mulf %204, %205 : vector<8x128xf32>
    %207 = arith.addf %201, %206 : vector<8x128xf32>
    %208 = vector.extract_strided_slice %189 {offsets = [0, 3], sizes = [8, 1], strides = [1, 1]} : vector<8x8xf32> to vector<8x1xf32>
    %209 = vector.extract_strided_slice %187 {offsets = [3, 0], sizes = [1, 128], strides = [1, 1]} : vector<8x128xf32> to vector<1x128xf32>
    %210 = vector.broadcast %208 : vector<8x1xf32> to vector<8x128xf32>
    %211 = vector.broadcast %209 : vector<1x128xf32> to vector<8x128xf32>
    %212 = arith.mulf %210, %211 : vector<8x128xf32>
    %213 = arith.addf %207, %212 : vector<8x128xf32>
    %214 = vector.extract_strided_slice %189 {offsets = [0, 4], sizes = [8, 1], strides = [1, 1]} : vector<8x8xf32> to vector<8x1xf32>
    %215 = vector.extract_strided_slice %187 {offsets = [4, 0], sizes = [1, 128], strides = [1, 1]} : vector<8x128xf32> to vector<1x128xf32>
    %216 = vector.broadcast %214 : vector<8x1xf32> to vector<8x128xf32>
    %217 = vector.broadcast %215 : vector<1x128xf32> to vector<8x128xf32>
    %218 = arith.mulf %216, %217 : vector<8x128xf32>
    %219 = arith.addf %213, %218 : vector<8x128xf32>
    %220 = vector.extract_strided_slice %189 {offsets = [0, 5], sizes = [8, 1], strides = [1, 1]} : vector<8x8xf32> to vector<8x1xf32>
    %221 = vector.extract_strided_slice %187 {offsets = [5, 0], sizes = [1, 128], strides = [1, 1]} : vector<8x128xf32> to vector<1x128xf32>
    %222 = vector.broadcast %220 : vector<8x1xf32> to vector<8x128xf32>
    %223 = vector.broadcast %221 : vector<1x128xf32> to vector<8x128xf32>
    %224 = arith.mulf %222, %223 : vector<8x128xf32>
    %225 = arith.addf %219, %224 : vector<8x128xf32>
    %226 = vector.extract_strided_slice %189 {offsets = [0, 6], sizes = [8, 1], strides = [1, 1]} : vector<8x8xf32> to vector<8x1xf32>
    %227 = vector.extract_strided_slice %187 {offsets = [6, 0], sizes = [1, 128], strides = [1, 1]} : vector<8x128xf32> to vector<1x128xf32>
    %228 = vector.broadcast %226 : vector<8x1xf32> to vector<8x128xf32>
    %229 = vector.broadcast %227 : vector<1x128xf32> to vector<8x128xf32>
    %230 = arith.mulf %228, %229 : vector<8x128xf32>
    %231 = arith.addf %225, %230 : vector<8x128xf32>
    %232 = vector.extract_strided_slice %189 {offsets = [0, 7], sizes = [8, 1], strides = [1, 1]} : vector<8x8xf32> to vector<8x1xf32>
    %233 = vector.extract_strided_slice %187 {offsets = [7, 0], sizes = [1, 128], strides = [1, 1]} : vector<8x128xf32> to vector<1x128xf32>
    %234 = vector.broadcast %232 : vector<8x1xf32> to vector<8x128xf32>
    %235 = vector.broadcast %233 : vector<1x128xf32> to vector<8x128xf32>
    %236 = arith.mulf %234, %235 : vector<8x128xf32>
    %237 = arith.addf %231, %236 : vector<8x128xf32>
    %238 = vector.extract_strided_slice %185 {offsets = [0, 1], sizes = [8, 128], strides = [1, 1]} : vector<8x130xf32> to vector<8x128xf32>
    %c1_27 = arith.constant 1 : index
    %c0_28 = arith.constant 0 : index
    %c0_29 = arith.constant 0 : index
    %239 = vector.load %arg6[%c1_27, %c0_28, %c0_29] : memref<3x8x8xf32, #tpu.memory_space<vmem>>, vector<1x8x8xf32>
    %240 = vector.shape_cast %239 : vector<1x8x8xf32> to vector<8x8xf32>
    %241 = vector.extract_strided_slice %240 {offsets = [0, 0], sizes = [8, 1], strides = [1, 1]} : vector<8x8xf32> to vector<8x1xf32>
    %242 = vector.extract_strided_slice %238 {offsets = [0, 0], sizes = [1, 128], strides = [1, 1]} : vector<8x128xf32> to vector<1x128xf32>
    %243 = vector.broadcast %241 : vector<8x1xf32> to vector<8x128xf32>
    %244 = vector.broadcast %242 : vector<1x128xf32> to vector<8x128xf32>
    %245 = arith.mulf %243, %244 : vector<8x128xf32>
    %246 = arith.addf %237, %245 : vector<8x128xf32>
    %247 = vector.extract_strided_slice %240 {offsets = [0, 1], sizes = [8, 1], strides = [1, 1]} : vector<8x8xf32> to vector<8x1xf32>
    %248 = vector.extract_strided_slice %238 {offsets = [1, 0], sizes = [1, 128], strides = [1, 1]} : vector<8x128xf32> to vector<1x128xf32>
    %249 = vector.broadcast %247 : vector<8x1xf32> to vector<8x128xf32>
    %250 = vector.broadcast %248 : vector<1x128xf32> to vector<8x128xf32>
    %251 = arith.mulf %249, %250 : vector<8x128xf32>
    %252 = arith.addf %246, %251 : vector<8x128xf32>
    %253 = vector.extract_strided_slice %240 {offsets = [0, 2], sizes = [8, 1], strides = [1, 1]} : vector<8x8xf32> to vector<8x1xf32>
    %254 = vector.extract_strided_slice %238 {offsets = [2, 0], sizes = [1, 128], strides = [1, 1]} : vector<8x128xf32> to vector<1x128xf32>
    %255 = vector.broadcast %253 : vector<8x1xf32> to vector<8x128xf32>
    %256 = vector.broadcast %254 : vector<1x128xf32> to vector<8x128xf32>
    %257 = arith.mulf %255, %256 : vector<8x128xf32>
    %258 = arith.addf %252, %257 : vector<8x128xf32>
    %259 = vector.extract_strided_slice %240 {offsets = [0, 3], sizes = [8, 1], strides = [1, 1]} : vector<8x8xf32> to vector<8x1xf32>
    %260 = vector.extract_strided_slice %238 {offsets = [3, 0], sizes = [1, 128], strides = [1, 1]} : vector<8x128xf32> to vector<1x128xf32>
    %261 = vector.broadcast %259 : vector<8x1xf32> to vector<8x128xf32>
    %262 = vector.broadcast %260 : vector<1x128xf32> to vector<8x128xf32>
    %263 = arith.mulf %261, %262 : vector<8x128xf32>
    %264 = arith.addf %258, %263 : vector<8x128xf32>
    %265 = vector.extract_strided_slice %240 {offsets = [0, 4], sizes = [8, 1], strides = [1, 1]} : vector<8x8xf32> to vector<8x1xf32>
    %266 = vector.extract_strided_slice %238 {offsets = [4, 0], sizes = [1, 128], strides = [1, 1]} : vector<8x128xf32> to vector<1x128xf32>
    %267 = vector.broadcast %265 : vector<8x1xf32> to vector<8x128xf32>
    %268 = vector.broadcast %266 : vector<1x128xf32> to vector<8x128xf32>
    %269 = arith.mulf %267, %268 : vector<8x128xf32>
    %270 = arith.addf %264, %269 : vector<8x128xf32>
    %271 = vector.extract_strided_slice %240 {offsets = [0, 5], sizes = [8, 1], strides = [1, 1]} : vector<8x8xf32> to vector<8x1xf32>
    %272 = vector.extract_strided_slice %238 {offsets = [5, 0], sizes = [1, 128], strides = [1, 1]} : vector<8x128xf32> to vector<1x128xf32>
    %273 = vector.broadcast %271 : vector<8x1xf32> to vector<8x128xf32>
    %274 = vector.broadcast %272 : vector<1x128xf32> to vector<8x128xf32>
    %275 = arith.mulf %273, %274 : vector<8x128xf32>
    %276 = arith.addf %270, %275 : vector<8x128xf32>
    %277 = vector.extract_strided_slice %240 {offsets = [0, 6], sizes = [8, 1], strides = [1, 1]} : vector<8x8xf32> to vector<8x1xf32>
    %278 = vector.extract_strided_slice %238 {offsets = [6, 0], sizes = [1, 128], strides = [1, 1]} : vector<8x128xf32> to vector<1x128xf32>
    %279 = vector.broadcast %277 : vector<8x1xf32> to vector<8x128xf32>
    %280 = vector.broadcast %278 : vector<1x128xf32> to vector<8x128xf32>
    %281 = arith.mulf %279, %280 : vector<8x128xf32>
    %282 = arith.addf %276, %281 : vector<8x128xf32>
    %283 = vector.extract_strided_slice %240 {offsets = [0, 7], sizes = [8, 1], strides = [1, 1]} : vector<8x8xf32> to vector<8x1xf32>
    %284 = vector.extract_strided_slice %238 {offsets = [7, 0], sizes = [1, 128], strides = [1, 1]} : vector<8x128xf32> to vector<1x128xf32>
    %285 = vector.broadcast %283 : vector<8x1xf32> to vector<8x128xf32>
    %286 = vector.broadcast %284 : vector<1x128xf32> to vector<8x128xf32>
    %287 = arith.mulf %285, %286 : vector<8x128xf32>
    %288 = arith.addf %282, %287 : vector<8x128xf32>
    %289 = vector.extract_strided_slice %185 {offsets = [0, 2], sizes = [8, 128], strides = [1, 1]} : vector<8x130xf32> to vector<8x128xf32>
    %c2_30 = arith.constant 2 : index
    %c0_31 = arith.constant 0 : index
    %c0_32 = arith.constant 0 : index
    %290 = vector.load %arg6[%c2_30, %c0_31, %c0_32] : memref<3x8x8xf32, #tpu.memory_space<vmem>>, vector<1x8x8xf32>
    %291 = vector.shape_cast %290 : vector<1x8x8xf32> to vector<8x8xf32>
    %292 = vector.extract_strided_slice %291 {offsets = [0, 0], sizes = [8, 1], strides = [1, 1]} : vector<8x8xf32> to vector<8x1xf32>
    %293 = vector.extract_strided_slice %289 {offsets = [0, 0], sizes = [1, 128], strides = [1, 1]} : vector<8x128xf32> to vector<1x128xf32>
    %294 = vector.broadcast %292 : vector<8x1xf32> to vector<8x128xf32>
    %295 = vector.broadcast %293 : vector<1x128xf32> to vector<8x128xf32>
    %296 = arith.mulf %294, %295 : vector<8x128xf32>
    %297 = arith.addf %288, %296 : vector<8x128xf32>
    %298 = vector.extract_strided_slice %291 {offsets = [0, 1], sizes = [8, 1], strides = [1, 1]} : vector<8x8xf32> to vector<8x1xf32>
    %299 = vector.extract_strided_slice %289 {offsets = [1, 0], sizes = [1, 128], strides = [1, 1]} : vector<8x128xf32> to vector<1x128xf32>
    %300 = vector.broadcast %298 : vector<8x1xf32> to vector<8x128xf32>
    %301 = vector.broadcast %299 : vector<1x128xf32> to vector<8x128xf32>
    %302 = arith.mulf %300, %301 : vector<8x128xf32>
    %303 = arith.addf %297, %302 : vector<8x128xf32>
    %304 = vector.extract_strided_slice %291 {offsets = [0, 2], sizes = [8, 1], strides = [1, 1]} : vector<8x8xf32> to vector<8x1xf32>
    %305 = vector.extract_strided_slice %289 {offsets = [2, 0], sizes = [1, 128], strides = [1, 1]} : vector<8x128xf32> to vector<1x128xf32>
    %306 = vector.broadcast %304 : vector<8x1xf32> to vector<8x128xf32>
    %307 = vector.broadcast %305 : vector<1x128xf32> to vector<8x128xf32>
    %308 = arith.mulf %306, %307 : vector<8x128xf32>
    %309 = arith.addf %303, %308 : vector<8x128xf32>
    %310 = vector.extract_strided_slice %291 {offsets = [0, 3], sizes = [8, 1], strides = [1, 1]} : vector<8x8xf32> to vector<8x1xf32>
    %311 = vector.extract_strided_slice %289 {offsets = [3, 0], sizes = [1, 128], strides = [1, 1]} : vector<8x128xf32> to vector<1x128xf32>
    %312 = vector.broadcast %310 : vector<8x1xf32> to vector<8x128xf32>
    %313 = vector.broadcast %311 : vector<1x128xf32> to vector<8x128xf32>
    %314 = arith.mulf %312, %313 : vector<8x128xf32>
    %315 = arith.addf %309, %314 : vector<8x128xf32>
    %316 = vector.extract_strided_slice %291 {offsets = [0, 4], sizes = [8, 1], strides = [1, 1]} : vector<8x8xf32> to vector<8x1xf32>
    %317 = vector.extract_strided_slice %289 {offsets = [4, 0], sizes = [1, 128], strides = [1, 1]} : vector<8x128xf32> to vector<1x128xf32>
    %318 = vector.broadcast %316 : vector<8x1xf32> to vector<8x128xf32>
    %319 = vector.broadcast %317 : vector<1x128xf32> to vector<8x128xf32>
    %320 = arith.mulf %318, %319 : vector<8x128xf32>
    %321 = arith.addf %315, %320 : vector<8x128xf32>
    %322 = vector.extract_strided_slice %291 {offsets = [0, 5], sizes = [8, 1], strides = [1, 1]} : vector<8x8xf32> to vector<8x1xf32>
    %323 = vector.extract_strided_slice %289 {offsets = [5, 0], sizes = [1, 128], strides = [1, 1]} : vector<8x128xf32> to vector<1x128xf32>
    %324 = vector.broadcast %322 : vector<8x1xf32> to vector<8x128xf32>
    %325 = vector.broadcast %323 : vector<1x128xf32> to vector<8x128xf32>
    %326 = arith.mulf %324, %325 : vector<8x128xf32>
    %327 = arith.addf %321, %326 : vector<8x128xf32>
    %328 = vector.extract_strided_slice %291 {offsets = [0, 6], sizes = [8, 1], strides = [1, 1]} : vector<8x8xf32> to vector<8x1xf32>
    %329 = vector.extract_strided_slice %289 {offsets = [6, 0], sizes = [1, 128], strides = [1, 1]} : vector<8x128xf32> to vector<1x128xf32>
    %330 = vector.broadcast %328 : vector<8x1xf32> to vector<8x128xf32>
    %331 = vector.broadcast %329 : vector<1x128xf32> to vector<8x128xf32>
    %332 = arith.mulf %330, %331 : vector<8x128xf32>
    %333 = arith.addf %327, %332 : vector<8x128xf32>
    %334 = vector.extract_strided_slice %291 {offsets = [0, 7], sizes = [8, 1], strides = [1, 1]} : vector<8x8xf32> to vector<8x1xf32>
    %335 = vector.extract_strided_slice %289 {offsets = [7, 0], sizes = [1, 128], strides = [1, 1]} : vector<8x128xf32> to vector<1x128xf32>
    %336 = vector.broadcast %334 : vector<8x1xf32> to vector<8x128xf32>
    %337 = vector.broadcast %335 : vector<1x128xf32> to vector<8x128xf32>
    %338 = arith.mulf %336, %337 : vector<8x128xf32>
    %339 = arith.addf %333, %338 : vector<8x128xf32>
    %c0_33 = arith.constant 0 : index
    %c0_34 = arith.constant 0 : index
    %340 = vector.load %arg7[%c0_33, %c0_34] : memref<8x1xf32, #tpu.memory_space<vmem>>, vector<8x1xf32>
    %341 = vector.broadcast %340 : vector<8x1xf32> to vector<8x128xf32>
    %342 = arith.addf %339, %341 : vector<8x128xf32>
    %cst_35 = arith.constant 0.000000e+00 : f32
    %343 = vector.broadcast %cst_35 : f32 to vector<8x128xf32>
    %344 = arith.maximumf %342, %343 : vector<8x128xf32>
    %345 = arith.addf %19, %344 : vector<8x128xf32>
    %c0_36 = arith.constant 0 : index
    %c0_37 = arith.constant 0 : index
    %c0_38 = arith.constant 0 : index
    %346 = vector.load %arg8[%c0_36, %c0_37, %c0_38] : memref<2x8x128xf32, #tpu.memory_space<vmem>>, vector<1x8x128xf32>
    %347 = vector.shape_cast %346 : vector<1x8x128xf32> to vector<8x128xf32>
    %348 = vector.shape_cast %345 : vector<8x128xf32> to vector<1x8x128xf32>
    tpu.vector_store %arg8[%c0_36, %c0_37, %c0_38], %348 {strides = array<i32>} : memref<2x8x128xf32, #tpu.memory_space<vmem>>, vector<1x8x128xf32>,
    %c1_39 = arith.constant 1 : index
    %c0_40 = arith.constant 0 : index
    %c0_41 = arith.constant 0 : index
    %349 = vector.load %arg2[%c1_39, %c0_40, %c0_41] : memref<2x8x128xf32, #tpu.memory_space<vmem>>, vector<1x8x128xf32>
    %350 = vector.shape_cast %349 : vector<1x8x128xf32> to vector<8x128xf32>
    %cst_42 = arith.constant 0.000000e+00 : f32
    %351 = vector.broadcast %cst_42 : f32 to vector<8x128xf32>
    %352 = arith.select %15, %350, %351 : vector<8x128xi1>, vector<8x128xf32>
    %c1_43 = arith.constant 1 : index
    %c0_44 = arith.constant 0 : index
    %c0_45 = arith.constant 0 : index
    %c0_46 = arith.constant 0 : index
    %353 = vector.load %arg3[%c1_43, %c0_44, %c0_45, %c0_46] : memref<2x1x8x256xf32, #tpu.memory_space<vmem>>, vector<1x1x8x128xf32>
    %354 = vector.shape_cast %353 : vector<1x1x8x128xf32> to vector<8x128xf32>
    %c1_47 = arith.constant 1 : index
    %c0_48 = arith.constant 0 : index
    %c0_49 = arith.constant 0 : index
    %c128_50 = arith.constant 128 : index
    %355 = vector.load %arg3[%c1_47, %c0_48, %c0_49, %c128_50] : memref<2x1x8x256xf32, #tpu.memory_space<vmem>>, vector<1x1x8x128xf32>
    %356 = vector.shape_cast %355 : vector<1x1x8x128xf32> to vector<8x128xf32>
    %357 = tpu.concatenate %354, %352, %356 in 1 : vector<8x128xf32>, vector<8x128xf32>, vector<8x128xf32> -> vector<8x384xf32>
    %cst_51 = arith.constant 0.000000e+00 : f32
    %358 = vector.broadcast %cst_51 : f32 to vector<8x130xf32>
    %359 = vector.extract_strided_slice %357 {offsets = [0, 126], sizes = [8, 130], strides = [1, 1]} : vector<8x384xf32> to vector<8x130xf32>
    %c0_52 = arith.constant 0 : index
    %c0_53 = arith.constant 0 : index
    %c0_54 = arith.constant 0 : index
    %360 = vector.load %arg4[%c0_52, %c0_53, %c0_54] : memref<3x8x8xf32, #tpu.memory_space<vmem>>, vector<1x8x8xf32>
    %361 = vector.shape_cast %360 : vector<1x8x8xf32> to vector<8x8xf32>
    %362 = vector.extract_strided_slice %361 {offsets = [0, 0], sizes = [8, 1], strides = [1, 1]} : vector<8x8xf32> to vector<8x1xf32>
    %363 = vector.extract_strided_slice %359 {offsets = [0, 0], sizes = [1, 130], strides = [1, 1]} : vector<8x130xf32> to vector<1x130xf32>
    %364 = vector.broadcast %362 : vector<8x1xf32> to vector<8x130xf32>
    %365 = vector.broadcast %363 : vector<1x130xf32> to vector<8x130xf32>
    %366 = arith.mulf %364, %365 : vector<8x130xf32>
    %367 = arith.addf %358, %366 : vector<8x130xf32>
    %368 = vector.extract_strided_slice %361 {offsets = [0, 1], sizes = [8, 1], strides = [1, 1]} : vector<8x8xf32> to vector<8x1xf32>
    %369 = vector.extract_strided_slice %359 {offsets = [1, 0], sizes = [1, 130], strides = [1, 1]} : vector<8x130xf32> to vector<1x130xf32>
    %370 = vector.broadcast %368 : vector<8x1xf32> to vector<8x130xf32>
    %371 = vector.broadcast %369 : vector<1x130xf32> to vector<8x130xf32>
    %372 = arith.mulf %370, %371 : vector<8x130xf32>
    %373 = arith.addf %367, %372 : vector<8x130xf32>
    %374 = vector.extract_strided_slice %361 {offsets = [0, 2], sizes = [8, 1], strides = [1, 1]} : vector<8x8xf32> to vector<8x1xf32>
    %375 = vector.extract_strided_slice %359 {offsets = [2, 0], sizes = [1, 130], strides = [1, 1]} : vector<8x130xf32> to vector<1x130xf32>
    %376 = vector.broadcast %374 : vector<8x1xf32> to vector<8x130xf32>
    %377 = vector.broadcast %375 : vector<1x130xf32> to vector<8x130xf32>
    %378 = arith.mulf %376, %377 : vector<8x130xf32>
    %379 = arith.addf %373, %378 : vector<8x130xf32>
    %380 = vector.extract_strided_slice %361 {offsets = [0, 3], sizes = [8, 1], strides = [1, 1]} : vector<8x8xf32> to vector<8x1xf32>
    %381 = vector.extract_strided_slice %359 {offsets = [3, 0], sizes = [1, 130], strides = [1, 1]} : vector<8x130xf32> to vector<1x130xf32>
    %382 = vector.broadcast %380 : vector<8x1xf32> to vector<8x130xf32>
    %383 = vector.broadcast %381 : vector<1x130xf32> to vector<8x130xf32>
    %384 = arith.mulf %382, %383 : vector<8x130xf32>
    %385 = arith.addf %379, %384 : vector<8x130xf32>
    %386 = vector.extract_strided_slice %361 {offsets = [0, 4], sizes = [8, 1], strides = [1, 1]} : vector<8x8xf32> to vector<8x1xf32>
    %387 = vector.extract_strided_slice %359 {offsets = [4, 0], sizes = [1, 130], strides = [1, 1]} : vector<8x130xf32> to vector<1x130xf32>
    %388 = vector.broadcast %386 : vector<8x1xf32> to vector<8x130xf32>
    %389 = vector.broadcast %387 : vector<1x130xf32> to vector<8x130xf32>
    %390 = arith.mulf %388, %389 : vector<8x130xf32>
    %391 = arith.addf %385, %390 : vector<8x130xf32>
    %392 = vector.extract_strided_slice %361 {offsets = [0, 5], sizes = [8, 1], strides = [1, 1]} : vector<8x8xf32> to vector<8x1xf32>
    %393 = vector.extract_strided_slice %359 {offsets = [5, 0], sizes = [1, 130], strides = [1, 1]} : vector<8x130xf32> to vector<1x130xf32>
    %394 = vector.broadcast %392 : vector<8x1xf32> to vector<8x130xf32>
    %395 = vector.broadcast %393 : vector<1x130xf32> to vector<8x130xf32>
    %396 = arith.mulf %394, %395 : vector<8x130xf32>
    %397 = arith.addf %391, %396 : vector<8x130xf32>
    %398 = vector.extract_strided_slice %361 {offsets = [0, 6], sizes = [8, 1], strides = [1, 1]} : vector<8x8xf32> to vector<8x1xf32>
    %399 = vector.extract_strided_slice %359 {offsets = [6, 0], sizes = [1, 130], strides = [1, 1]} : vector<8x130xf32> to vector<1x130xf32>
    %400 = vector.broadcast %398 : vector<8x1xf32> to vector<8x130xf32>
    %401 = vector.broadcast %399 : vector<1x130xf32> to vector<8x130xf32>
    %402 = arith.mulf %400, %401 : vector<8x130xf32>
    %403 = arith.addf %397, %402 : vector<8x130xf32>
    %404 = vector.extract_strided_slice %361 {offsets = [0, 7], sizes = [8, 1], strides = [1, 1]} : vector<8x8xf32> to vector<8x1xf32>
    %405 = vector.extract_strided_slice %359 {offsets = [7, 0], sizes = [1, 130], strides = [1, 1]} : vector<8x130xf32> to vector<1x130xf32>
    %406 = vector.broadcast %404 : vector<8x1xf32> to vector<8x130xf32>
    %407 = vector.broadcast %405 : vector<1x130xf32> to vector<8x130xf32>
    %408 = arith.mulf %406, %407 : vector<8x130xf32>
    %409 = arith.addf %403, %408 : vector<8x130xf32>
    %410 = vector.extract_strided_slice %357 {offsets = [0, 127], sizes = [8, 130], strides = [1, 1]} : vector<8x384xf32> to vector<8x130xf32>
    %c1_55 = arith.constant 1 : index
    %c0_56 = arith.constant 0 : index
    %c0_57 = arith.constant 0 : index
    %411 = vector.load %arg4[%c1_55, %c0_56, %c0_57] : memref<3x8x8xf32, #tpu.memory_space<vmem>>, vector<1x8x8xf32>
    %412 = vector.shape_cast %411 : vector<1x8x8xf32> to vector<8x8xf32>
    %413 = vector.extract_strided_slice %412 {offsets = [0, 0], sizes = [8, 1], strides = [1, 1]} : vector<8x8xf32> to vector<8x1xf32>
    %414 = vector.extract_strided_slice %410 {offsets = [0, 0], sizes = [1, 130], strides = [1, 1]} : vector<8x130xf32> to vector<1x130xf32>
    %415 = vector.broadcast %413 : vector<8x1xf32> to vector<8x130xf32>
    %416 = vector.broadcast %414 : vector<1x130xf32> to vector<8x130xf32>
    %417 = arith.mulf %415, %416 : vector<8x130xf32>
    %418 = arith.addf %409, %417 : vector<8x130xf32>
    %419 = vector.extract_strided_slice %412 {offsets = [0, 1], sizes = [8, 1], strides = [1, 1]} : vector<8x8xf32> to vector<8x1xf32>
    %420 = vector.extract_strided_slice %410 {offsets = [1, 0], sizes = [1, 130], strides = [1, 1]} : vector<8x130xf32> to vector<1x130xf32>
    %421 = vector.broadcast %419 : vector<8x1xf32> to vector<8x130xf32>
    %422 = vector.broadcast %420 : vector<1x130xf32> to vector<8x130xf32>
    %423 = arith.mulf %421, %422 : vector<8x130xf32>
    %424 = arith.addf %418, %423 : vector<8x130xf32>
    %425 = vector.extract_strided_slice %412 {offsets = [0, 2], sizes = [8, 1], strides = [1, 1]} : vector<8x8xf32> to vector<8x1xf32>
    %426 = vector.extract_strided_slice %410 {offsets = [2, 0], sizes = [1, 130], strides = [1, 1]} : vector<8x130xf32> to vector<1x130xf32>
    %427 = vector.broadcast %425 : vector<8x1xf32> to vector<8x130xf32>
    %428 = vector.broadcast %426 : vector<1x130xf32> to vector<8x130xf32>
    %429 = arith.mulf %427, %428 : vector<8x130xf32>
    %430 = arith.addf %424, %429 : vector<8x130xf32>
    %431 = vector.extract_strided_slice %412 {offsets = [0, 3], sizes = [8, 1], strides = [1, 1]} : vector<8x8xf32> to vector<8x1xf32>
    %432 = vector.extract_strided_slice %410 {offsets = [3, 0], sizes = [1, 130], strides = [1, 1]} : vector<8x130xf32> to vector<1x130xf32>
    %433 = vector.broadcast %431 : vector<8x1xf32> to vector<8x130xf32>
    %434 = vector.broadcast %432 : vector<1x130xf32> to vector<8x130xf32>
    %435 = arith.mulf %433, %434 : vector<8x130xf32>
    %436 = arith.addf %430, %435 : vector<8x130xf32>
    %437 = vector.extract_strided_slice %412 {offsets = [0, 4], sizes = [8, 1], strides = [1, 1]} : vector<8x8xf32> to vector<8x1xf32>
    %438 = vector.extract_strided_slice %410 {offsets = [4, 0], sizes = [1, 130], strides = [1, 1]} : vector<8x130xf32> to vector<1x130xf32>
    %439 = vector.broadcast %437 : vector<8x1xf32> to vector<8x130xf32>
    %440 = vector.broadcast %438 : vector<1x130xf32> to vector<8x130xf32>
    %441 = arith.mulf %439, %440 : vector<8x130xf32>
    %442 = arith.addf %436, %441 : vector<8x130xf32>
    %443 = vector.extract_strided_slice %412 {offsets = [0, 5], sizes = [8, 1], strides = [1, 1]} : vector<8x8xf32> to vector<8x1xf32>
    %444 = vector.extract_strided_slice %410 {offsets = [5, 0], sizes = [1, 130], strides = [1, 1]} : vector<8x130xf32> to vector<1x130xf32>
    %445 = vector.broadcast %443 : vector<8x1xf32> to vector<8x130xf32>
    %446 = vector.broadcast %444 : vector<1x130xf32> to vector<8x130xf32>
    %447 = arith.mulf %445, %446 : vector<8x130xf32>
    %448 = arith.addf %442, %447 : vector<8x130xf32>
    %449 = vector.extract_strided_slice %412 {offsets = [0, 6], sizes = [8, 1], strides = [1, 1]} : vector<8x8xf32> to vector<8x1xf32>
    %450 = vector.extract_strided_slice %410 {offsets = [6, 0], sizes = [1, 130], strides = [1, 1]} : vector<8x130xf32> to vector<1x130xf32>
    %451 = vector.broadcast %449 : vector<8x1xf32> to vector<8x130xf32>
    %452 = vector.broadcast %450 : vector<1x130xf32> to vector<8x130xf32>
    %453 = arith.mulf %451, %452 : vector<8x130xf32>
    %454 = arith.addf %448, %453 : vector<8x130xf32>
    %455 = vector.extract_strided_slice %412 {offsets = [0, 7], sizes = [8, 1], strides = [1, 1]} : vector<8x8xf32> to vector<8x1xf32>
    %456 = vector.extract_strided_slice %410 {offsets = [7, 0], sizes = [1, 130], strides = [1, 1]} : vector<8x130xf32> to vector<1x130xf32>
    %457 = vector.broadcast %455 : vector<8x1xf32> to vector<8x130xf32>
    %458 = vector.broadcast %456 : vector<1x130xf32> to vector<8x130xf32>
    %459 = arith.mulf %457, %458 : vector<8x130xf32>
    %460 = arith.addf %454, %459 : vector<8x130xf32>
    %461 = vector.extract_strided_slice %357 {offsets = [0, 128], sizes = [8, 130], strides = [1, 1]} : vector<8x384xf32> to vector<8x130xf32>
    %c2_58 = arith.constant 2 : index
    %c0_59 = arith.constant 0 : index
    %c0_60 = arith.constant 0 : index
    %462 = vector.load %arg4[%c2_58, %c0_59, %c0_60] : memref<3x8x8xf32, #tpu.memory_space<vmem>>, vector<1x8x8xf32>
    %463 = vector.shape_cast %462 : vector<1x8x8xf32> to vector<8x8xf32>
    %464 = vector.extract_strided_slice %463 {offsets = [0, 0], sizes = [8, 1], strides = [1, 1]} : vector<8x8xf32> to vector<8x1xf32>
    %465 = vector.extract_strided_slice %461 {offsets = [0, 0], sizes = [1, 130], strides = [1, 1]} : vector<8x130xf32> to vector<1x130xf32>
    %466 = vector.broadcast %464 : vector<8x1xf32> to vector<8x130xf32>
    %467 = vector.broadcast %465 : vector<1x130xf32> to vector<8x130xf32>
    %468 = arith.mulf %466, %467 : vector<8x130xf32>
    %469 = arith.addf %460, %468 : vector<8x130xf32>
    %470 = vector.extract_strided_slice %463 {offsets = [0, 1], sizes = [8, 1], strides = [1, 1]} : vector<8x8xf32> to vector<8x1xf32>
    %471 = vector.extract_strided_slice %461 {offsets = [1, 0], sizes = [1, 130], strides = [1, 1]} : vector<8x130xf32> to vector<1x130xf32>
    %472 = vector.broadcast %470 : vector<8x1xf32> to vector<8x130xf32>
    %473 = vector.broadcast %471 : vector<1x130xf32> to vector<8x130xf32>
    %474 = arith.mulf %472, %473 : vector<8x130xf32>
    %475 = arith.addf %469, %474 : vector<8x130xf32>
    %476 = vector.extract_strided_slice %463 {offsets = [0, 2], sizes = [8, 1], strides = [1, 1]} : vector<8x8xf32> to vector<8x1xf32>
    %477 = vector.extract_strided_slice %461 {offsets = [2, 0], sizes = [1, 130], strides = [1, 1]} : vector<8x130xf32> to vector<1x130xf32>
    %478 = vector.broadcast %476 : vector<8x1xf32> to vector<8x130xf32>
    %479 = vector.broadcast %477 : vector<1x130xf32> to vector<8x130xf32>
    %480 = arith.mulf %478, %479 : vector<8x130xf32>
    %481 = arith.addf %475, %480 : vector<8x130xf32>
    %482 = vector.extract_strided_slice %463 {offsets = [0, 3], sizes = [8, 1], strides = [1, 1]} : vector<8x8xf32> to vector<8x1xf32>
    %483 = vector.extract_strided_slice %461 {offsets = [3, 0], sizes = [1, 130], strides = [1, 1]} : vector<8x130xf32> to vector<1x130xf32>
    %484 = vector.broadcast %482 : vector<8x1xf32> to vector<8x130xf32>
    %485 = vector.broadcast %483 : vector<1x130xf32> to vector<8x130xf32>
    %486 = arith.mulf %484, %485 : vector<8x130xf32>
    %487 = arith.addf %481, %486 : vector<8x130xf32>
    %488 = vector.extract_strided_slice %463 {offsets = [0, 4], sizes = [8, 1], strides = [1, 1]} : vector<8x8xf32> to vector<8x1xf32>
    %489 = vector.extract_strided_slice %461 {offsets = [4, 0], sizes = [1, 130], strides = [1, 1]} : vector<8x130xf32> to vector<1x130xf32>
    %490 = vector.broadcast %488 : vector<8x1xf32> to vector<8x130xf32>
    %491 = vector.broadcast %489 : vector<1x130xf32> to vector<8x130xf32>
    %492 = arith.mulf %490, %491 : vector<8x130xf32>
    %493 = arith.addf %487, %492 : vector<8x130xf32>
    %494 = vector.extract_strided_slice %463 {offsets = [0, 5], sizes = [8, 1], strides = [1, 1]} : vector<8x8xf32> to vector<8x1xf32>
    %495 = vector.extract_strided_slice %461 {offsets = [5, 0], sizes = [1, 130], strides = [1, 1]} : vector<8x130xf32> to vector<1x130xf32>
    %496 = vector.broadcast %494 : vector<8x1xf32> to vector<8x130xf32>
    %497 = vector.broadcast %495 : vector<1x130xf32> to vector<8x130xf32>
    %498 = arith.mulf %496, %497 : vector<8x130xf32>
    %499 = arith.addf %493, %498 : vector<8x130xf32>
    %500 = vector.extract_strided_slice %463 {offsets = [0, 6], sizes = [8, 1], strides = [1, 1]} : vector<8x8xf32> to vector<8x1xf32>
    %501 = vector.extract_strided_slice %461 {offsets = [6, 0], sizes = [1, 130], strides = [1, 1]} : vector<8x130xf32> to vector<1x130xf32>
    %502 = vector.broadcast %500 : vector<8x1xf32> to vector<8x130xf32>
    %503 = vector.broadcast %501 : vector<1x130xf32> to vector<8x130xf32>
    %504 = arith.mulf %502, %503 : vector<8x130xf32>
    %505 = arith.addf %499, %504 : vector<8x130xf32>
    %506 = vector.extract_strided_slice %463 {offsets = [0, 7], sizes = [8, 1], strides = [1, 1]} : vector<8x8xf32> to vector<8x1xf32>
    %507 = vector.extract_strided_slice %461 {offsets = [7, 0], sizes = [1, 130], strides = [1, 1]} : vector<8x130xf32> to vector<1x130xf32>
    %508 = vector.broadcast %506 : vector<8x1xf32> to vector<8x130xf32>
    %509 = vector.broadcast %507 : vector<1x130xf32> to vector<8x130xf32>
    %510 = arith.mulf %508, %509 : vector<8x130xf32>
    %511 = arith.addf %505, %510 : vector<8x130xf32>
    %c0_61 = arith.constant 0 : index
    %c0_62 = arith.constant 0 : index
    %512 = vector.load %arg5[%c0_61, %c0_62] : memref<8x1xf32, #tpu.memory_space<vmem>>, vector<8x1xf32>
    %513 = vector.broadcast %512 : vector<8x1xf32> to vector<8x130xf32>
    %514 = arith.addf %511, %513 : vector<8x130xf32>
    %cst_63 = arith.constant 0.000000e+00 : f32
    %515 = vector.broadcast %cst_63 : f32 to vector<8x130xf32>
    %516 = arith.maximumf %514, %515 : vector<8x130xf32>
    %cst_64 = arith.constant 0.000000e+00 : f32
    %517 = vector.broadcast %cst_64 : f32 to vector<8x130xf32>
    %518 = arith.select %9, %516, %517 : vector<8x130xi1>, vector<8x130xf32>
    %cst_65 = arith.constant 0.000000e+00 : f32
    %519 = vector.broadcast %cst_65 : f32 to vector<8x128xf32>
    %520 = vector.extract_strided_slice %518 {offsets = [0, 0], sizes = [8, 128], strides = [1, 1]} : vector<8x130xf32> to vector<8x128xf32>
    %c0_66 = arith.constant 0 : index
    %c0_67 = arith.constant 0 : index
    %c0_68 = arith.constant 0 : index
    %521 = vector.load %arg6[%c0_66, %c0_67, %c0_68] : memref<3x8x8xf32, #tpu.memory_space<vmem>>, vector<1x8x8xf32>
    %522 = vector.shape_cast %521 : vector<1x8x8xf32> to vector<8x8xf32>
    %523 = vector.extract_strided_slice %522 {offsets = [0, 0], sizes = [8, 1], strides = [1, 1]} : vector<8x8xf32> to vector<8x1xf32>
    %524 = vector.extract_strided_slice %520 {offsets = [0, 0], sizes = [1, 128], strides = [1, 1]} : vector<8x128xf32> to vector<1x128xf32>
    %525 = vector.broadcast %523 : vector<8x1xf32> to vector<8x128xf32>
    %526 = vector.broadcast %524 : vector<1x128xf32> to vector<8x128xf32>
    %527 = arith.mulf %525, %526 : vector<8x128xf32>
    %528 = arith.addf %519, %527 : vector<8x128xf32>
    %529 = vector.extract_strided_slice %522 {offsets = [0, 1], sizes = [8, 1], strides = [1, 1]} : vector<8x8xf32> to vector<8x1xf32>
    %530 = vector.extract_strided_slice %520 {offsets = [1, 0], sizes = [1, 128], strides = [1, 1]} : vector<8x128xf32> to vector<1x128xf32>
    %531 = vector.broadcast %529 : vector<8x1xf32> to vector<8x128xf32>
    %532 = vector.broadcast %530 : vector<1x128xf32> to vector<8x128xf32>
    %533 = arith.mulf %531, %532 : vector<8x128xf32>
    %534 = arith.addf %528, %533 : vector<8x128xf32>
    %535 = vector.extract_strided_slice %522 {offsets = [0, 2], sizes = [8, 1], strides = [1, 1]} : vector<8x8xf32> to vector<8x1xf32>
    %536 = vector.extract_strided_slice %520 {offsets = [2, 0], sizes = [1, 128], strides = [1, 1]} : vector<8x128xf32> to vector<1x128xf32>
    %537 = vector.broadcast %535 : vector<8x1xf32> to vector<8x128xf32>
    %538 = vector.broadcast %536 : vector<1x128xf32> to vector<8x128xf32>
    %539 = arith.mulf %537, %538 : vector<8x128xf32>
    %540 = arith.addf %534, %539 : vector<8x128xf32>
    %541 = vector.extract_strided_slice %522 {offsets = [0, 3], sizes = [8, 1], strides = [1, 1]} : vector<8x8xf32> to vector<8x1xf32>
    %542 = vector.extract_strided_slice %520 {offsets = [3, 0], sizes = [1, 128], strides = [1, 1]} : vector<8x128xf32> to vector<1x128xf32>
    %543 = vector.broadcast %541 : vector<8x1xf32> to vector<8x128xf32>
    %544 = vector.broadcast %542 : vector<1x128xf32> to vector<8x128xf32>
    %545 = arith.mulf %543, %544 : vector<8x128xf32>
    %546 = arith.addf %540, %545 : vector<8x128xf32>
    %547 = vector.extract_strided_slice %522 {offsets = [0, 4], sizes = [8, 1], strides = [1, 1]} : vector<8x8xf32> to vector<8x1xf32>
    %548 = vector.extract_strided_slice %520 {offsets = [4, 0], sizes = [1, 128], strides = [1, 1]} : vector<8x128xf32> to vector<1x128xf32>
    %549 = vector.broadcast %547 : vector<8x1xf32> to vector<8x128xf32>
    %550 = vector.broadcast %548 : vector<1x128xf32> to vector<8x128xf32>
    %551 = arith.mulf %549, %550 : vector<8x128xf32>
    %552 = arith.addf %546, %551 : vector<8x128xf32>
    %553 = vector.extract_strided_slice %522 {offsets = [0, 5], sizes = [8, 1], strides = [1, 1]} : vector<8x8xf32> to vector<8x1xf32>
    %554 = vector.extract_strided_slice %520 {offsets = [5, 0], sizes = [1, 128], strides = [1, 1]} : vector<8x128xf32> to vector<1x128xf32>
    %555 = vector.broadcast %553 : vector<8x1xf32> to vector<8x128xf32>
    %556 = vector.broadcast %554 : vector<1x128xf32> to vector<8x128xf32>
    %557 = arith.mulf %555, %556 : vector<8x128xf32>
    %558 = arith.addf %552, %557 : vector<8x128xf32>
    %559 = vector.extract_strided_slice %522 {offsets = [0, 6], sizes = [8, 1], strides = [1, 1]} : vector<8x8xf32> to vector<8x1xf32>
    %560 = vector.extract_strided_slice %520 {offsets = [6, 0], sizes = [1, 128], strides = [1, 1]} : vector<8x128xf32> to vector<1x128xf32>
    %561 = vector.broadcast %559 : vector<8x1xf32> to vector<8x128xf32>
    %562 = vector.broadcast %560 : vector<1x128xf32> to vector<8x128xf32>
    %563 = arith.mulf %561, %562 : vector<8x128xf32>
    %564 = arith.addf %558, %563 : vector<8x128xf32>
    %565 = vector.extract_strided_slice %522 {offsets = [0, 7], sizes = [8, 1], strides = [1, 1]} : vector<8x8xf32> to vector<8x1xf32>
    %566 = vector.extract_strided_slice %520 {offsets = [7, 0], sizes = [1, 128], strides = [1, 1]} : vector<8x128xf32> to vector<1x128xf32>
    %567 = vector.broadcast %565 : vector<8x1xf32> to vector<8x128xf32>
    %568 = vector.broadcast %566 : vector<1x128xf32> to vector<8x128xf32>
    %569 = arith.mulf %567, %568 : vector<8x128xf32>
    %570 = arith.addf %564, %569 : vector<8x128xf32>
    %571 = vector.extract_strided_slice %518 {offsets = [0, 1], sizes = [8, 128], strides = [1, 1]} : vector<8x130xf32> to vector<8x128xf32>
    %c1_69 = arith.constant 1 : index
    %c0_70 = arith.constant 0 : index
    %c0_71 = arith.constant 0 : index
    %572 = vector.load %arg6[%c1_69, %c0_70, %c0_71] : memref<3x8x8xf32, #tpu.memory_space<vmem>>, vector<1x8x8xf32>
    %573 = vector.shape_cast %572 : vector<1x8x8xf32> to vector<8x8xf32>
    %574 = vector.extract_strided_slice %573 {offsets = [0, 0], sizes = [8, 1], strides = [1, 1]} : vector<8x8xf32> to vector<8x1xf32>
    %575 = vector.extract_strided_slice %571 {offsets = [0, 0], sizes = [1, 128], strides = [1, 1]} : vector<8x128xf32> to vector<1x128xf32>
    %576 = vector.broadcast %574 : vector<8x1xf32> to vector<8x128xf32>
    %577 = vector.broadcast %575 : vector<1x128xf32> to vector<8x128xf32>
    %578 = arith.mulf %576, %577 : vector<8x128xf32>
    %579 = arith.addf %570, %578 : vector<8x128xf32>
    %580 = vector.extract_strided_slice %573 {offsets = [0, 1], sizes = [8, 1], strides = [1, 1]} : vector<8x8xf32> to vector<8x1xf32>
    %581 = vector.extract_strided_slice %571 {offsets = [1, 0], sizes = [1, 128], strides = [1, 1]} : vector<8x128xf32> to vector<1x128xf32>
    %582 = vector.broadcast %580 : vector<8x1xf32> to vector<8x128xf32>
    %583 = vector.broadcast %581 : vector<1x128xf32> to vector<8x128xf32>
    %584 = arith.mulf %582, %583 : vector<8x128xf32>
    %585 = arith.addf %579, %584 : vector<8x128xf32>
    %586 = vector.extract_strided_slice %573 {offsets = [0, 2], sizes = [8, 1], strides = [1, 1]} : vector<8x8xf32> to vector<8x1xf32>
    %587 = vector.extract_strided_slice %571 {offsets = [2, 0], sizes = [1, 128], strides = [1, 1]} : vector<8x128xf32> to vector<1x128xf32>
    %588 = vector.broadcast %586 : vector<8x1xf32> to vector<8x128xf32>
    %589 = vector.broadcast %587 : vector<1x128xf32> to vector<8x128xf32>
    %590 = arith.mulf %588, %589 : vector<8x128xf32>
    %591 = arith.addf %585, %590 : vector<8x128xf32>
    %592 = vector.extract_strided_slice %573 {offsets = [0, 3], sizes = [8, 1], strides = [1, 1]} : vector<8x8xf32> to vector<8x1xf32>
    %593 = vector.extract_strided_slice %571 {offsets = [3, 0], sizes = [1, 128], strides = [1, 1]} : vector<8x128xf32> to vector<1x128xf32>
    %594 = vector.broadcast %592 : vector<8x1xf32> to vector<8x128xf32>
    %595 = vector.broadcast %593 : vector<1x128xf32> to vector<8x128xf32>
    %596 = arith.mulf %594, %595 : vector<8x128xf32>
    %597 = arith.addf %591, %596 : vector<8x128xf32>
    %598 = vector.extract_strided_slice %573 {offsets = [0, 4], sizes = [8, 1], strides = [1, 1]} : vector<8x8xf32> to vector<8x1xf32>
    %599 = vector.extract_strided_slice %571 {offsets = [4, 0], sizes = [1, 128], strides = [1, 1]} : vector<8x128xf32> to vector<1x128xf32>
    %600 = vector.broadcast %598 : vector<8x1xf32> to vector<8x128xf32>
    %601 = vector.broadcast %599 : vector<1x128xf32> to vector<8x128xf32>
    %602 = arith.mulf %600, %601 : vector<8x128xf32>
    %603 = arith.addf %597, %602 : vector<8x128xf32>
    %604 = vector.extract_strided_slice %573 {offsets = [0, 5], sizes = [8, 1], strides = [1, 1]} : vector<8x8xf32> to vector<8x1xf32>
    %605 = vector.extract_strided_slice %571 {offsets = [5, 0], sizes = [1, 128], strides = [1, 1]} : vector<8x128xf32> to vector<1x128xf32>
    %606 = vector.broadcast %604 : vector<8x1xf32> to vector<8x128xf32>
    %607 = vector.broadcast %605 : vector<1x128xf32> to vector<8x128xf32>
    %608 = arith.mulf %606, %607 : vector<8x128xf32>
    %609 = arith.addf %603, %608 : vector<8x128xf32>
    %610 = vector.extract_strided_slice %573 {offsets = [0, 6], sizes = [8, 1], strides = [1, 1]} : vector<8x8xf32> to vector<8x1xf32>
    %611 = vector.extract_strided_slice %571 {offsets = [6, 0], sizes = [1, 128], strides = [1, 1]} : vector<8x128xf32> to vector<1x128xf32>
    %612 = vector.broadcast %610 : vector<8x1xf32> to vector<8x128xf32>
    %613 = vector.broadcast %611 : vector<1x128xf32> to vector<8x128xf32>
    %614 = arith.mulf %612, %613 : vector<8x128xf32>
    %615 = arith.addf %609, %614 : vector<8x128xf32>
    %616 = vector.extract_strided_slice %573 {offsets = [0, 7], sizes = [8, 1], strides = [1, 1]} : vector<8x8xf32> to vector<8x1xf32>
    %617 = vector.extract_strided_slice %571 {offsets = [7, 0], sizes = [1, 128], strides = [1, 1]} : vector<8x128xf32> to vector<1x128xf32>
    %618 = vector.broadcast %616 : vector<8x1xf32> to vector<8x128xf32>
    %619 = vector.broadcast %617 : vector<1x128xf32> to vector<8x128xf32>
    %620 = arith.mulf %618, %619 : vector<8x128xf32>
    %621 = arith.addf %615, %620 : vector<8x128xf32>
    %622 = vector.extract_strided_slice %518 {offsets = [0, 2], sizes = [8, 128], strides = [1, 1]} : vector<8x130xf32> to vector<8x128xf32>
    %c2_72 = arith.constant 2 : index
    %c0_73 = arith.constant 0 : index
    %c0_74 = arith.constant 0 : index
    %623 = vector.load %arg6[%c2_72, %c0_73, %c0_74] : memref<3x8x8xf32, #tpu.memory_space<vmem>>, vector<1x8x8xf32>
    %624 = vector.shape_cast %623 : vector<1x8x8xf32> to vector<8x8xf32>
    %625 = vector.extract_strided_slice %624 {offsets = [0, 0], sizes = [8, 1], strides = [1, 1]} : vector<8x8xf32> to vector<8x1xf32>
    %626 = vector.extract_strided_slice %622 {offsets = [0, 0], sizes = [1, 128], strides = [1, 1]} : vector<8x128xf32> to vector<1x128xf32>
    %627 = vector.broadcast %625 : vector<8x1xf32> to vector<8x128xf32>
    %628 = vector.broadcast %626 : vector<1x128xf32> to vector<8x128xf32>
    %629 = arith.mulf %627, %628 : vector<8x128xf32>
    %630 = arith.addf %621, %629 : vector<8x128xf32>
    %631 = vector.extract_strided_slice %624 {offsets = [0, 1], sizes = [8, 1], strides = [1, 1]} : vector<8x8xf32> to vector<8x1xf32>
    %632 = vector.extract_strided_slice %622 {offsets = [1, 0], sizes = [1, 128], strides = [1, 1]} : vector<8x128xf32> to vector<1x128xf32>
    %633 = vector.broadcast %631 : vector<8x1xf32> to vector<8x128xf32>
    %634 = vector.broadcast %632 : vector<1x128xf32> to vector<8x128xf32>
    %635 = arith.mulf %633, %634 : vector<8x128xf32>
    %636 = arith.addf %630, %635 : vector<8x128xf32>
    %637 = vector.extract_strided_slice %624 {offsets = [0, 2], sizes = [8, 1], strides = [1, 1]} : vector<8x8xf32> to vector<8x1xf32>
    %638 = vector.extract_strided_slice %622 {offsets = [2, 0], sizes = [1, 128], strides = [1, 1]} : vector<8x128xf32> to vector<1x128xf32>
    %639 = vector.broadcast %637 : vector<8x1xf32> to vector<8x128xf32>
    %640 = vector.broadcast %638 : vector<1x128xf32> to vector<8x128xf32>
    %641 = arith.mulf %639, %640 : vector<8x128xf32>
    %642 = arith.addf %636, %641 : vector<8x128xf32>
    %643 = vector.extract_strided_slice %624 {offsets = [0, 3], sizes = [8, 1], strides = [1, 1]} : vector<8x8xf32> to vector<8x1xf32>
    %644 = vector.extract_strided_slice %622 {offsets = [3, 0], sizes = [1, 128], strides = [1, 1]} : vector<8x128xf32> to vector<1x128xf32>
    %645 = vector.broadcast %643 : vector<8x1xf32> to vector<8x128xf32>
    %646 = vector.broadcast %644 : vector<1x128xf32> to vector<8x128xf32>
    %647 = arith.mulf %645, %646 : vector<8x128xf32>
    %648 = arith.addf %642, %647 : vector<8x128xf32>
    %649 = vector.extract_strided_slice %624 {offsets = [0, 4], sizes = [8, 1], strides = [1, 1]} : vector<8x8xf32> to vector<8x1xf32>
    %650 = vector.extract_strided_slice %622 {offsets = [4, 0], sizes = [1, 128], strides = [1, 1]} : vector<8x128xf32> to vector<1x128xf32>
    %651 = vector.broadcast %649 : vector<8x1xf32> to vector<8x128xf32>
    %652 = vector.broadcast %650 : vector<1x128xf32> to vector<8x128xf32>
    %653 = arith.mulf %651, %652 : vector<8x128xf32>
    %654 = arith.addf %648, %653 : vector<8x128xf32>
    %655 = vector.extract_strided_slice %624 {offsets = [0, 5], sizes = [8, 1], strides = [1, 1]} : vector<8x8xf32> to vector<8x1xf32>
    %656 = vector.extract_strided_slice %622 {offsets = [5, 0], sizes = [1, 128], strides = [1, 1]} : vector<8x128xf32> to vector<1x128xf32>
    %657 = vector.broadcast %655 : vector<8x1xf32> to vector<8x128xf32>
    %658 = vector.broadcast %656 : vector<1x128xf32> to vector<8x128xf32>
    %659 = arith.mulf %657, %658 : vector<8x128xf32>
    %660 = arith.addf %654, %659 : vector<8x128xf32>
    %661 = vector.extract_strided_slice %624 {offsets = [0, 6], sizes = [8, 1], strides = [1, 1]} : vector<8x8xf32> to vector<8x1xf32>
    %662 = vector.extract_strided_slice %622 {offsets = [6, 0], sizes = [1, 128], strides = [1, 1]} : vector<8x128xf32> to vector<1x128xf32>
    %663 = vector.broadcast %661 : vector<8x1xf32> to vector<8x128xf32>
    %664 = vector.broadcast %662 : vector<1x128xf32> to vector<8x128xf32>
    %665 = arith.mulf %663, %664 : vector<8x128xf32>
    %666 = arith.addf %660, %665 : vector<8x128xf32>
    %667 = vector.extract_strided_slice %624 {offsets = [0, 7], sizes = [8, 1], strides = [1, 1]} : vector<8x8xf32> to vector<8x1xf32>
    %668 = vector.extract_strided_slice %622 {offsets = [7, 0], sizes = [1, 128], strides = [1, 1]} : vector<8x128xf32> to vector<1x128xf32>
    %669 = vector.broadcast %667 : vector<8x1xf32> to vector<8x128xf32>
    %670 = vector.broadcast %668 : vector<1x128xf32> to vector<8x128xf32>
    %671 = arith.mulf %669, %670 : vector<8x128xf32>
    %672 = arith.addf %666, %671 : vector<8x128xf32>
    %c0_75 = arith.constant 0 : index
    %c0_76 = arith.constant 0 : index
    %673 = vector.load %arg7[%c0_75, %c0_76] : memref<8x1xf32, #tpu.memory_space<vmem>>, vector<8x1xf32>
    %674 = vector.broadcast %673 : vector<8x1xf32> to vector<8x128xf32>
    %675 = arith.addf %672, %674 : vector<8x128xf32>
    %cst_77 = arith.constant 0.000000e+00 : f32
    %676 = vector.broadcast %cst_77 : f32 to vector<8x128xf32>
    %677 = arith.maximumf %675, %676 : vector<8x128xf32>
    %678 = arith.addf %352, %677 : vector<8x128xf32>
    %c1_78 = arith.constant 1 : index
    %c0_79 = arith.constant 0 : index
    %c0_80 = arith.constant 0 : index
    %679 = vector.load %arg8[%c1_78, %c0_79, %c0_80] : memref<2x8x128xf32, #tpu.memory_space<vmem>>, vector<1x8x128xf32>
    %680 = vector.shape_cast %679 : vector<1x8x128xf32> to vector<8x128xf32>
    %681 = vector.shape_cast %678 : vector<8x128xf32> to vector<1x8x128xf32>
    tpu.vector_store %arg8[%c1_78, %c0_79, %c0_80], %681 {strides = array<i32>} : memref<2x8x128xf32, #tpu.memory_space<vmem>>, vector<1x8x128xf32>,
    return
  }
  func.func @transform_0(%arg0: i32, %arg1: i32) -> (i32, i32, i32) {
    %c0_i32 = arith.constant 0 : i32
    %c0_i32_0 = arith.constant 0 : i32
    return %arg0, %c0_i32, %arg1 : i32, i32, i32
  }
  func.func @transform_1(%arg0: i32, %arg1: i32) -> (i32, i32, i32, i32) {
    %c0_i32 = arith.constant 0 : i32
    %c0_i32_0 = arith.constant 0 : i32
    %c0_i32_1 = arith.constant 0 : i32
    return %arg0, %arg1, %c0_i32, %c0_i32_0 : i32, i32, i32, i32
  }
  func.func @transform_2(%arg0: i32, %arg1: i32) -> (i32, i32, i32) {
    %c0_i32 = arith.constant 0 : i32
    %c0_i32_0 = arith.constant 0 : i32
    %c0_i32_1 = arith.constant 0 : i32
    %c0_i32_2 = arith.constant 0 : i32
    return %c0_i32, %c0_i32_0, %c0_i32_1 : i32, i32, i32
  }
  func.func @transform_3(%arg0: i32, %arg1: i32) -> (i32, i32) {
    %c0_i32 = arith.constant 0 : i32
    %c0_i32_0 = arith.constant 0 : i32
    %c0_i32_1 = arith.constant 0 : i32
    return %c0_i32, %c0_i32_0 : i32, i32
  }
  func.func @transform_4(%arg0: i32, %arg1: i32) -> (i32, i32, i32) {
    %c0_i32 = arith.constant 0 : i32
    %c0_i32_0 = arith.constant 0 : i32
    %c0_i32_1 = arith.constant 0 : i32
    %c0_i32_2 = arith.constant 0 : i32
    return %c0_i32, %c0_i32_0, %c0_i32_1 : i32, i32, i32
  }
  func.func @transform_5(%arg0: i32, %arg1: i32) -> (i32, i32) {
    %c0_i32 = arith.constant 0 : i32
    %c0_i32_0 = arith.constant 0 : i32
    %c0_i32_1 = arith.constant 0 : i32
    return %c0_i32, %c0_i32_0 : i32, i32
  }
  func.func @transform_6(%arg0: i32, %arg1: i32) -> (i32, i32, i32) {
    %c0_i32 = arith.constant 0 : i32
    %c0_i32_0 = arith.constant 0 : i32
    return %arg0, %c0_i32, %arg1 : i32, i32, i32
  }
}

</mosaic_0001>

<llo_original>
// kernel: temporal_block.1
$region0: #{temporal_block.1}
  #allocation0 [shape = 'u32[]', space=smem, size = 0x4, offset = 0x4, fixed_abs, tag = 'smem constant byte address 0x4 - core index']
  #allocation1 [shape = 'u32[72,128]{1,0:T(1,128)}', space=vmem, size = 0x9000, scoped, tag = 'internal scratch']
  %s0 = inlined_call_operand.hbm [shape: f32[2,8,16], index: 0, kind: input, shape index: {}]
  %s1 = inlined_call_operand.vmem [shape: f32[2,1,8,256], index: 1, kind: input, shape index: {}]
  %s2 = inlined_call_operand.vmem [shape: f32[3,8,8], index: 2, kind: input, shape index: {}]
  %s3 = inlined_call_operand.vmem [shape: f32[8,1], index: 3, kind: input, shape index: {}]
  %s4 = inlined_call_operand.vmem [shape: f32[3,8,8], index: 4, kind: input, shape index: {}]
  %s5 = inlined_call_operand.vmem [shape: f32[8,1], index: 5, kind: input, shape index: {}]
  %s6 = inlined_call_operand.hbm [shape: f32[2,8,16], index: 6, kind: output, shape index: {}]
  %s7 = sld [smem:[#allocation0]]
  $region38: #{temporal_block.1} parent=0
    _
  %s9 = ssub.s32 1, %s7
  %s10 = scalar_select 0, %s9, %s7
  $region1: #{temporal_block.1} parent=0
    #allocation2 [shape = 'u8[8192]{0}', space=vmem, size = 0x2000, scoped, tag = 'input window, operand 0, single buffered']
    #allocation3 [shape = 's32[1]{0}', space=sflag, size = 0x4, scoped, tag = 'scoped memory for temporal_block.1']
    #allocation4 [shape = 's32[1]{0}', space=sflag, size = 0x4, scoped, tag = 'scoped memory for temporal_block.1']
    #allocation5 [shape = 'u8[8192]{0}', space=vmem, size = 0x2000, scoped, tag = 'output window, operand 0, single buffered']
    %11 = vsyncpa [#allocation3], 0
    %12 = vsyncpa [#allocation4], 0
    // Predicated region
    $region2: #{temporal_block.1} parent=1 // pred_check
      _
    $region3: #{temporal_block.1} parent=1 // pred_check_branch
      %14 = sbr.rel (0) target = $region5
    $region4: #{temporal_block.1} parent=1 // pred_region
      %16 = vsyncadd [#allocation3], 0
      %s17 = sshll.u32 %s0, 4
      %s18 = int_to_ptr.hbm [resolvable:$true] %s17
      %s19 = sshll.u32 [#allocation2], 4
      %s20 = int_to_ptr.vmem [resolvable:$true] %s19
      %25 = dma.hbm_to_vmem [thread:$0]  %s18, 256, %s20, [#allocation3], 128, 128, 8
    $region5: #{temporal_block.1} parent=1 // pred_fallthru
      _
    // Predicated region
    $region6: #{temporal_block.1} parent=1 // pred_check
      _
    $region7: #{temporal_block.1} parent=1 // pred_check_branch
      %27 = sbr.rel (0) target = $region9
    $region8: #{temporal_block.1} parent=1 // pred_region
      _
    $region9: #{temporal_block.1} parent=1 // pred_fallthru
      _
    // Predicated region
    $region10: #{temporal_block.1} parent=1 // pred_check
      _
    $region11: #{temporal_block.1} parent=1 // pred_check_branch
      %29 = sbr.rel (0) target = $region13
    $region12: #{temporal_block.1} parent=1 // pred_region
      _
    $region13: #{temporal_block.1} parent=1 // pred_fallthru
      _
    // Predicated region
    $region14: #{temporal_block.1} parent=1 // pred_check
      _
    $region15: #{temporal_block.1} parent=1 // pred_check_branch
      %31 = sbr.rel (0) target = $region17
    $region16: #{temporal_block.1} parent=1 // pred_region
      _
    $region17: #{temporal_block.1} parent=1 // pred_fallthru
      _
    // Predicated region
    $region18: #{temporal_block.1} parent=1 // pred_check
      _
    $region19: #{temporal_block.1} parent=1 // pred_check_branch
      %33 = sbr.rel (0) target = $region21
    $region20: #{temporal_block.1} parent=1 // pred_region
      _
    $region21: #{temporal_block.1} parent=1 // pred_fallthru
      _
    // Predicated region
    $region22: #{temporal_block.1} parent=1 // pred_check
      _
    $region23: #{temporal_block.1} parent=1 // pred_check_branch
      %35 = sbr.rel (0) target = $region25
    $region24: #{temporal_block.1} parent=1 // pred_region
      _
    $region25: #{temporal_block.1} parent=1 // pred_fallthru
      _
    // Predicated region
    $region26: #{temporal_block.1} parent=1 // pred_check
      _
    $region27: #{temporal_block.1} parent=1 // pred_check_branch
      %37 = sbr.rel (0) target = $region29
    $region28: #{temporal_block.1} parent=1 // pred_region
      %39 = dma.done [#allocation3], 256
    $region29: #{temporal_block.1} parent=1 // pred_fallthru
      _
    %v40 = vlaneseq
    %v41 = vand.u32 %v40, 127
    %v42 = vadd.s32 %v41, 128
    %s43 = smul.u32 0, 128
    %s44 = ssub.s32 %s43, 1
    %v45 = vstv %s44
    %v46 = vadd.s32 %v41, %v45
    %v47 = vadd.s32 %v42, %v45
    %vm48 = vcmp.ge.s32.totalorder %v46, 0
    %vm49 = vcmp.ge.s32.totalorder %v47, 0
    %vm50 = vcmp.lt.s32.totalorder %v46, 16
    %vm51 = vcmp.lt.s32.totalorder %v47, 16
    %vm52 = vmand %vm48, %vm50
    %vm53 = vmand %vm49, %vm51
    %v54 = vstv %s43
    %v55 = vadd.s32 %v41, %v54
    %vm56 = vcmp.lt.s32.totalorder %v55, 16
    %v57 = vld [vmem:[#allocation2] sm:$0xff]
    %v58 = vsel %vm56, %v57, 0.0
    %v59 = vld [vmem:[%s1] sm:$0xff]
    %v60 = vld [vmem:[%s1 + $0x8] sm:$0xff]
    %v61 = vld [vmem:[%s2] sm:$0xff]
    %63 = vset.pattern.permute.xlu0 0
    %64 = vperm.xlu0 %63, %v61
    %v65 = vpop.permute.xlu0 %64
    %v67 = vperm.slane %v59, 0
    %v68 = vperm.slane %v58, 0
    %v69 = vmul.f32 %v65, %v67
    %v70 = vmul.f32 %v65, %v68
    %v71 = vadd.f32 %v69, 0.0
    %v72 = vadd.f32 %v70, 0.0
    %73 = vset.pattern.permute.xlu0 1
    %74 = vperm.xlu0 %73, %v61
    %v75 = vpop.permute.xlu0 %74
    %v77 = vperm.slane %v59, 1
    %v78 = vperm.slane %v58, 1
    %v79 = vmul.f32 %v75, %v77
    %v80 = vmul.f32 %v75, %v78
    %v81 = vadd.f32 %v71, %v79
    %v82 = vadd.f32 %v72, %v80
    %83 = vset.pattern.permute.xlu0 2
    %84 = vperm.xlu0 %83, %v61
    %v85 = vpop.permute.xlu0 %84
    %v87 = vperm.slane %v59, 2
    %v88 = vperm.slane %v58, 2
    %v89 = vmul.f32 %v85, %v87
    %v90 = vmul.f32 %v85, %v88
    %v91 = vadd.f32 %v81, %v89
    %v92 = vadd.f32 %v82, %v90
    %93 = vset.pattern.permute.xlu0 3
    %94 = vperm.xlu0 %93, %v61
    %v95 = vpop.permute.xlu0 %94
    %v97 = vperm.slane %v59, 3
    %v98 = vperm.slane %v58, 3
    %v99 = vmul.f32 %v95, %v97
    %v100 = vmul.f32 %v95, %v98
    %v101 = vadd.f32 %v91, %v99
    %v102 = vadd.f32 %v92, %v100
    %103 = vset.pattern.permute.xlu0 4
    %104 = vperm.xlu0 %103, %v61
    %v105 = vpop.permute.xlu0 %104
    %v107 = vperm.slane %v59, 4
    %v108 = vperm.slane %v58, 4
    %v109 = vmul.f32 %v105, %v107
    %v110 = vmul.f32 %v105, %v108
    %v111 = vadd.f32 %v101, %v109
    %v112 = vadd.f32 %v102, %v110
    %113 = vset.pattern.permute.xlu0 5
    %114 = vperm.xlu0 %113, %v61
    %v115 = vpop.permute.xlu0 %114
    %v117 = vperm.slane %v59, 5
    %v118 = vperm.slane %v58, 5
    %v119 = vmul.f32 %v115, %v117
    %v120 = vmul.f32 %v115, %v118
    %v121 = vadd.f32 %v111, %v119
    %v122 = vadd.f32 %v112, %v120
    %123 = vset.pattern.permute.xlu0 6
    %124 = vperm.xlu0 %123, %v61
    %v125 = vpop.permute.xlu0 %124
    %v127 = vperm.slane %v59, 6
    %v128 = vperm.slane %v58, 6
    %v129 = vmul.f32 %v125, %v127
    %v130 = vmul.f32 %v125, %v128
    %v131 = vadd.f32 %v121, %v129
    %v132 = vadd.f32 %v122, %v130
    %133 = vset.pattern.permute.xlu0 7
    %134 = vperm.xlu0 %133, %v61
    %v135 = vpop.permute.xlu0 %134
    %v137 = vperm.slane %v59, 7
    %v138 = vperm.slane %v58, 7
    %v139 = vmul.f32 %v135, %v137
    %v140 = vmul.f32 %v135, %v138
    %v141 = vadd.f32 %v131, %v139
    %v142 = vadd.f32 %v132, %v140
    %s143 = scalar_lea.vmem %s2, 8
    %v144 = vld [vmem:[%s143] sm:$0xff]
    %146 = vset.pattern.permute.xlu0 0
    %147 = vperm.xlu0 %146, %v144
    %v148 = vpop.permute.xlu0 %147
    %v150 = vperm.slane %v60, 0
    %v151 = vmul.f32 %v148, %v67
    %v152 = vmul.f32 %v148, %v68
    %v153 = vmul.f32 %v148, %v150
    %157 = vrot.lane.b32.xlu0 %v151, 127
    %v158 = vpop.permute.xlu0 %157
    %159 = vrot.lane.b32.xlu0 %v152, 127
    %v160 = vpop.permute.xlu0 %159
    %161 = vrot.lane.b32.xlu0 %v153, 127
    %v162 = vpop.permute.xlu0 %161
    %vm163 = vcmask 1039360
    %v164 = vsel %vm163, %v158, %v160
    %v165 = vsel %vm163, %v160, %v162
    %v168 = vadd.f32 %v141, %v164
    %v169 = vadd.f32 %v142, %v165
    %170 = vset.pattern.permute.xlu0 1
    %171 = vperm.xlu0 %170, %v144
    %v172 = vpop.permute.xlu0 %171
    %v174 = vperm.slane %v60, 1
    %v175 = vmul.f32 %v172, %v77
    %v176 = vmul.f32 %v172, %v78
    %v177 = vmul.f32 %v172, %v174
    %181 = vrot.lane.b32.xlu0 %v175, 127
    %v182 = vpop.permute.xlu0 %181
    %183 = vrot.lane.b32.xlu0 %v176, 127
    %v184 = vpop.permute.xlu0 %183
    %185 = vrot.lane.b32.xlu0 %v177, 127
    %v186 = vpop.permute.xlu0 %185
    %v187 = vsel %vm163, %v182, %v184
    %v188 = vsel %vm163, %v184, %v186
    %v191 = vadd.f32 %v168, %v187
    %v192 = vadd.f32 %v169, %v188
    %193 = vset.pattern.permute.xlu0 2
    %194 = vperm.xlu0 %193, %v144
    %v195 = vpop.permute.xlu0 %194
    %v197 = vperm.slane %v60, 2
    %v198 = vmul.f32 %v195, %v87
    %v199 = vmul.f32 %v195, %v88
    %v200 = vmul.f32 %v195, %v197
    %204 = vrot.lane.b32.xlu0 %v198, 127
    %v205 = vpop.permute.xlu0 %204
    %206 = vrot.lane.b32.xlu0 %v199, 127
    %v207 = vpop.permute.xlu0 %206
    %208 = vrot.lane.b32.xlu0 %v200, 127
    %v209 = vpop.permute.xlu0 %208
    %v210 = vsel %vm163, %v205, %v207
    %v211 = vsel %vm163, %v207, %v209
    %v214 = vadd.f32 %v191, %v210
    %v215 = vadd.f32 %v192, %v211
    %216 = vset.pattern.permute.xlu0 3
    %217 = vperm.xlu0 %216, %v144
    %v218 = vpop.permute.xlu0 %217
    %v220 = vperm.slane %v60, 3
    %v221 = vmul.f32 %v218, %v97
    %v222 = vmul.f32 %v218, %v98
    %v223 = vmul.f32 %v218, %v220
    %227 = vrot.lane.b32.xlu0 %v221, 127
    %v228 = vpop.permute.xlu0 %227
    %229 = vrot.lane.b32.xlu0 %v222, 127
    %v230 = vpop.permute.xlu0 %229
    %231 = vrot.lane.b32.xlu0 %v223, 127
    %v232 = vpop.permute.xlu0 %231
    %v233 = vsel %vm163, %v228, %v230
    %v234 = vsel %vm163, %v230, %v232
    %v237 = vadd.f32 %v214, %v233
    %v238 = vadd.f32 %v215, %v234
    %239 = vset.pattern.permute.xlu0 4
    %240 = vperm.xlu0 %239, %v144
    %v241 = vpop.permute.xlu0 %240
    %v243 = vperm.slane %v60, 4
    %v244 = vmul.f32 %v241, %v107
    %v245 = vmul.f32 %v241, %v108
    %v246 = vmul.f32 %v241, %v243
    %250 = vrot.lane.b32.xlu0 %v244, 127
    %v251 = vpop.permute.xlu0 %250
    %252 = vrot.lane.b32.xlu0 %v245, 127
    %v253 = vpop.permute.xlu0 %252
    %254 = vrot.lane.b32.xlu0 %v246, 127
    %v255 = vpop.permute.xlu0 %254
    %v256 = vsel %vm163, %v251, %v253
    %v257 = vsel %vm163, %v253, %v255
    %v260 = vadd.f32 %v237, %v256
    %v261 = vadd.f32 %v238, %v257
    %262 = vset.pattern.permute.xlu0 5
    %263 = vperm.xlu0 %262, %v144
    %v264 = vpop.permute.xlu0 %263
    %v266 = vperm.slane %v60, 5
    %v267 = vmul.f32 %v264, %v117
    %v268 = vmul.f32 %v264, %v118
    %v269 = vmul.f32 %v264, %v266
    %273 = vrot.lane.b32.xlu0 %v267, 127
    %v274 = vpop.permute.xlu0 %273
    %275 = vrot.lane.b32.xlu0 %v268, 127
    %v276 = vpop.permute.xlu0 %275
    %277 = vrot.lane.b32.xlu0 %v269, 127
    %v278 = vpop.permute.xlu0 %277
    %v279 = vsel %vm163, %v274, %v276
    %v280 = vsel %vm163, %v276, %v278
    %v283 = vadd.f32 %v260, %v279
    %v284 = vadd.f32 %v261, %v280
    %285 = vset.pattern.permute.xlu0 6
    %286 = vperm.xlu0 %285, %v144
    %v287 = vpop.permute.xlu0 %286
    %v289 = vperm.slane %v60, 6
    %v290 = vmul.f32 %v287, %v127
    %v291 = vmul.f32 %v287, %v128
    %v292 = vmul.f32 %v287, %v289
    %296 = vrot.lane.b32.xlu0 %v290, 127
    %v297 = vpop.permute.xlu0 %296
    %298 = vrot.lane.b32.xlu0 %v291, 127
    %v299 = vpop.permute.xlu0 %298
    %300 = vrot.lane.b32.xlu0 %v292, 127
    %v301 = vpop.permute.xlu0 %300
    %v302 = vsel %vm163, %v297, %v299
    %v303 = vsel %vm163, %v299, %v301
    %v306 = vadd.f32 %v283, %v302
    %v307 = vadd.f32 %v284, %v303
    %308 = vset.pattern.permute.xlu0 7
    %309 = vperm.xlu0 %308, %v144
    %v310 = vpop.permute.xlu0 %309
    %v312 = vperm.slane %v60, 7
    %v313 = vmul.f32 %v310, %v137
    %v314 = vmul.f32 %v310, %v138
    %v315 = vmul.f32 %v310, %v312
    %319 = vrot.lane.b32.xlu0 %v313, 127
    %v320 = vpop.permute.xlu0 %319
    %321 = vrot.lane.b32.xlu0 %v314, 127
    %v322 = vpop.permute.xlu0 %321
    %323 = vrot.lane.b32.xlu0 %v315, 127
    %v324 = vpop.permute.xlu0 %323
    %v325 = vsel %vm163, %v320, %v322
    %v326 = vsel %vm163, %v322, %v324
    %v329 = vadd.f32 %v306, %v325
    %v330 = vadd.f32 %v307, %v326
    %s331 = scalar_lea.vmem %s2, 16
    %v332 = vld [vmem:[%s331] sm:$0xff]
    %334 = vset.pattern.permute.xlu0 0
    %335 = vperm.xlu0 %334, %v332
    %v336 = vpop.permute.xlu0 %335
    %v338 = vmul.f32 %v336, %v68
    %v339 = vmul.f32 %v336, %v150
    %342 = vrot.lane.b32.xlu0 %v338, 126
    %v343 = vpop.permute.xlu0 %342
    %344 = vrot.lane.b32.xlu0 %v339, 126
    %v345 = vpop.permute.xlu0 %344
    %vm346 = vcmask 1031168
    %v347 = vsel %vm346, %v343, %v345
    %v350 = vadd.f32 %v329, %v343
    %v351 = vadd.f32 %v330, %v347
    %352 = vset.pattern.permute.xlu0 1
    %353 = vperm.xlu0 %352, %v332
    %v354 = vpop.permute.xlu0 %353
    %v356 = vmul.f32 %v354, %v78
    %v357 = vmul.f32 %v354, %v174
    %360 = vrot.lane.b32.xlu0 %v356, 126
    %v361 = vpop.permute.xlu0 %360
    %362 = vrot.lane.b32.xlu0 %v357, 126
    %v363 = vpop.permute.xlu0 %362
    %v364 = vsel %vm346, %v361, %v363
    %v367 = vadd.f32 %v350, %v361
    %v368 = vadd.f32 %v351, %v364
    %369 = vset.pattern.permute.xlu0 2
    %370 = vperm.xlu0 %369, %v332
    %v371 = vpop.permute.xlu0 %370
    %v373 = vmul.f32 %v371, %v88
    %v374 = vmul.f32 %v371, %v197
    %377 = vrot.lane.b32.xlu0 %v373, 126
    %v378 = vpop.permute.xlu0 %377
    %379 = vrot.lane.b32.xlu0 %v374, 126
    %v380 = vpop.permute.xlu0 %379
    %v381 = vsel %vm346, %v378, %v380
    %v384 = vadd.f32 %v367, %v378
    %v385 = vadd.f32 %v368, %v381
    %386 = vset.pattern.permute.xlu0 3
    %387 = vperm.xlu0 %386, %v332
    %v388 = vpop.permute.xlu0 %387
    %v390 = vmul.f32 %v388, %v98
    %v391 = vmul.f32 %v388, %v220
    %394 = vrot.lane.b32.xlu0 %v390, 126
    %v395 = vpop.permute.xlu0 %394
    %396 = vrot.lane.b32.xlu0 %v391, 126
    %v397 = vpop.permute.xlu0 %396
    %v398 = vsel %vm346, %v395, %v397
    %v401 = vadd.f32 %v384, %v395
    %v402 = vadd.f32 %v385, %v398
    %403 = vset.pattern.permute.xlu0 4
    %404 = vperm.xlu0 %403, %v332
    %v405 = vpop.permute.xlu0 %404
    %v407 = vmul.f32 %v405, %v108
    %v408 = vmul.f32 %v405, %v243
    %411 = vrot.lane.b32.xlu0 %v407, 126
    %v412 = vpop.permute.xlu0 %411
    %413 = vrot.lane.b32.xlu0 %v408, 126
    %v414 = vpop.permute.xlu0 %413
    %v415 = vsel %vm346, %v412, %v414
    %v418 = vadd.f32 %v401, %v412
    %v419 = vadd.f32 %v402, %v415
    %420 = vset.pattern.permute.xlu0 5
    %421 = vperm.xlu0 %420, %v332
    %v422 = vpop.permute.xlu0 %421
    %v424 = vmul.f32 %v422, %v118
    %v425 = vmul.f32 %v422, %v266
    %428 = vrot.lane.b32.xlu0 %v424, 126
    %v429 = vpop.permute.xlu0 %428
    %430 = vrot.lane.b32.xlu0 %v425, 126
    %v431 = vpop.permute.xlu0 %430
    %v432 = vsel %vm346, %v429, %v431
    %v435 = vadd.f32 %v418, %v429
    %v436 = vadd.f32 %v419, %v432
    %437 = vset.pattern.permute.xlu0 6
    %438 = vperm.xlu0 %437, %v332
    %v439 = vpop.permute.xlu0 %438
    %v441 = vmul.f32 %v439, %v128
    %v442 = vmul.f32 %v439, %v289
    %445 = vrot.lane.b32.xlu0 %v441, 126
    %v446 = vpop.permute.xlu0 %445
    %447 = vrot.lane.b32.xlu0 %v442, 126
    %v448 = vpop.permute.xlu0 %447
    %v449 = vsel %vm346, %v446, %v448
    %v452 = vadd.f32 %v435, %v446
    %v453 = vadd.f32 %v436, %v449
    %454 = vset.pattern.permute.xlu0 7
    %455 = vperm.xlu0 %454, %v332
    %v456 = vpop.permute.xlu0 %455
    %v458 = vmul.f32 %v456, %v138
    %v459 = vmul.f32 %v456, %v312
    %462 = vrot.lane.b32.xlu0 %v458, 126
    %v463 = vpop.permute.xlu0 %462
    %464 = vrot.lane.b32.xlu0 %v459, 126
    %v465 = vpop.permute.xlu0 %464
    %v466 = vsel %vm346, %v463, %v465
    %v469 = vadd.f32 %v452, %v463
    %v470 = vadd.f32 %v453, %v466
    %v471 = vld [vmem:[%s3] sm:$0xff]
    %473 = vset.pattern.permute.xlu0 0
    %474 = vperm.xlu0 %473, %v471
    %v475 = vpop.permute.xlu0 %474
    %v477 = vadd.f32 %v469, %v475
    %v478 = vadd.f32 %v470, %v475
    %v479 = vmax.f32 %v477, 0.0
    %v480 = vmax.f32 %v478, 0.0
    %483 = vrot.lane.b32.xlu0 %v479, 2
    %v484 = vpop.permute.xlu0 %483
    %485 = vrot.lane.b32.xlu0 %v480, 2
    %v486 = vpop.permute.xlu0 %485
    %vm487 = vcmask 15360
    %v488 = vsel %vm487, %v484, %v486
    %v491 = vsel %vm52, %v488, 0.0
    %v492 = vsel %vm53, %v486, 0.0
    %v493 = vld [vmem:[%s4] sm:$0xff]
    %495 = vset.pattern.permute.xlu0 0
    %496 = vperm.xlu0 %495, %v493
    %v497 = vpop.permute.xlu0 %496
    %v499 = vperm.slane %v491, 0
    %v500 = vmul.f32 %v497, %v499
    %v501 = vadd.f32 %v500, 0.0
    %502 = vset.pattern.permute.xlu0 1
    %503 = vperm.xlu0 %502, %v493
    %v504 = vpop.permute.xlu0 %503
    %v506 = vperm.slane %v491, 1
    %v507 = vmul.f32 %v504, %v506
    %v508 = vadd.f32 %v501, %v507
    %509 = vset.pattern.permute.xlu0 2
    %510 = vperm.xlu0 %509, %v493
    %v511 = vpop.permute.xlu0 %510
    %v513 = vperm.slane %v491, 2
    %v514 = vmul.f32 %v511, %v513
    %v515 = vadd.f32 %v508, %v514
    %516 = vset.pattern.permute.xlu0 3
    %517 = vperm.xlu0 %516, %v493
    %v518 = vpop.permute.xlu0 %517
    %v520 = vperm.slane %v491, 3
    %v521 = vmul.f32 %v518, %v520
    %v522 = vadd.f32 %v515, %v521
    %523 = vset.pattern.permute.xlu0 4
    %524 = vperm.xlu0 %523, %v493
    %v525 = vpop.permute.xlu0 %524
    %v527 = vperm.slane %v491, 4
    %v528 = vmul.f32 %v525, %v527
    %v529 = vadd.f32 %v522, %v528
    %530 = vset.pattern.permute.xlu0 5
    %531 = vperm.xlu0 %530, %v493
    %v532 = vpop.permute.xlu0 %531
    %v534 = vperm.slane %v491, 5
    %v535 = vmul.f32 %v532, %v534
    %v536 = vadd.f32 %v529, %v535
    %537 = vset.pattern.permute.xlu0 6
    %538 = vperm.xlu0 %537, %v493
    %v539 = vpop.permute.xlu0 %538
    %v541 = vperm.slane %v491, 6
    %v542 = vmul.f32 %v539, %v541
    %v543 = vadd.f32 %v536, %v542
    %544 = vset.pattern.permute.xlu0 7
    %545 = vperm.xlu0 %544, %v493
    %v546 = vpop.permute.xlu0 %545
    %v548 = vperm.slane %v491, 7
    %v549 = vmul.f32 %v546, %v548
    %v550 = vadd.f32 %v543, %v549
    %s551 = scalar_lea.vmem %s4, 8
    %v552 = vld [vmem:[%s551] sm:$0xff]
    %554 = vset.pattern.permute.xlu0 0
    %555 = vperm.xlu0 %554, %v552
    %v556 = vpop.permute.xlu0 %555
    %v558 = vperm.slane %v492, 0
    %v559 = vmul.f32 %v556, %v499
    %v560 = vmul.f32 %v556, %v558
    %563 = vrot.lane.b32.xlu0 %v559, 127
    %v564 = vpop.permute.xlu0 %563
    %565 = vrot.lane.b32.xlu0 %v560, 127
    %v566 = vpop.permute.xlu0 %565
    %v567 = vsel %vm163, %v564, %v566
    %v569 = vadd.f32 %v550, %v567
    %570 = vset.pattern.permute.xlu0 1
    %571 = vperm.xlu0 %570, %v552
    %v572 = vpop.permute.xlu0 %571
    %v574 = vperm.slane %v492, 1
    %v575 = vmul.f32 %v572, %v506
    %v576 = vmul.f32 %v572, %v574
    %579 = vrot.lane.b32.xlu0 %v575, 127
    %v580 = vpop.permute.xlu0 %579
    %581 = vrot.lane.b32.xlu0 %v576, 127
    %v582 = vpop.permute.xlu0 %581
    %v583 = vsel %vm163, %v580, %v582
    %v585 = vadd.f32 %v569, %v583
    %586 = vset.pattern.permute.xlu0 2
    %587 = vperm.xlu0 %586, %v552
    %v588 = vpop.permute.xlu0 %587
    %v590 = vperm.slane %v492, 2
    %v591 = vmul.f32 %v588, %v513
    %v592 = vmul.f32 %v588, %v590
    %595 = vrot.lane.b32.xlu0 %v591, 127
    %v596 = vpop.permute.xlu0 %595
    %597 = vrot.lane.b32.xlu0 %v592, 127
    %v598 = vpop.permute.xlu0 %597
    %v599 = vsel %vm163, %v596, %v598
    %v601 = vadd.f32 %v585, %v599
    %602 = vset.pattern.permute.xlu0 3
    %603 = vperm.xlu0 %602, %v552
    %v604 = vpop.permute.xlu0 %603
    %v606 = vperm.slane %v492, 3
    %v607 = vmul.f32 %v604, %v520
    %v608 = vmul.f32 %v604, %v606
    %611 = vrot.lane.b32.xlu0 %v607, 127
    %v612 = vpop.permute.xlu0 %611
    %613 = vrot.lane.b32.xlu0 %v608, 127
    %v614 = vpop.permute.xlu0 %613
    %v615 = vsel %vm163, %v612, %v614
    %v617 = vadd.f32 %v601, %v615
    %618 = vset.pattern.permute.xlu0 4
    %619 = vperm.xlu0 %618, %v552
    %v620 = vpop.permute.xlu0 %619
    %v622 = vperm.slane %v492, 4
    %v623 = vmul.f32 %v620, %v527
    %v624 = vmul.f32 %v620, %v622
    %627 = vrot.lane.b32.xlu0 %v623, 127
    %v628 = vpop.permute.xlu0 %627
    %629 = vrot.lane.b32.xlu0 %v624, 127
    %v630 = vpop.permute.xlu0 %629
    %v631 = vsel %vm163, %v628, %v630
    %v633 = vadd.f32 %v617, %v631
    %634 = vset.pattern.permute.xlu0 5
    %635 = vperm.xlu0 %634, %v552
    %v636 = vpop.permute.xlu0 %635
    %v638 = vperm.slane %v492, 5
    %v639 = vmul.f32 %v636, %v534
    %v640 = vmul.f32 %v636, %v638
    %643 = vrot.lane.b32.xlu0 %v639, 127
    %v644 = vpop.permute.xlu0 %643
    %645 = vrot.lane.b32.xlu0 %v640, 127
    %v646 = vpop.permute.xlu0 %645
    %v647 = vsel %vm163, %v644, %v646
    %v649 = vadd.f32 %v633, %v647
    %650 = vset.pattern.permute.xlu0 6
    %651 = vperm.xlu0 %650, %v552
    %v652 = vpop.permute.xlu0 %651
    %v654 = vperm.slane %v492, 6
    %v655 = vmul.f32 %v652, %v541
    %v656 = vmul.f32 %v652, %v654
    %659 = vrot.lane.b32.xlu0 %v655, 127
    %v660 = vpop.permute.xlu0 %659
    %661 = vrot.lane.b32.xlu0 %v656, 127
    %v662 = vpop.permute.xlu0 %661
    %v663 = vsel %vm163, %v660, %v662
    %v665 = vadd.f32 %v649, %v663
    %666 = vset.pattern.permute.xlu0 7
    %667 = vperm.xlu0 %666, %v552
    %v668 = vpop.permute.xlu0 %667
    %v670 = vperm.slane %v492, 7
    %v671 = vmul.f32 %v668, %v548
    %v672 = vmul.f32 %v668, %v670
    %675 = vrot.lane.b32.xlu0 %v671, 127
    %v676 = vpop.permute.xlu0 %675
    %677 = vrot.lane.b32.xlu0 %v672, 127
    %v678 = vpop.permute.xlu0 %677
    %v679 = vsel %vm163, %v676, %v678
    %v681 = vadd.f32 %v665, %v679
    %s682 = scalar_lea.vmem %s4, 16
    %v683 = vld [vmem:[%s682] sm:$0xff]
    %685 = vset.pattern.permute.xlu0 0
    %686 = vperm.xlu0 %685, %v683
    %v687 = vpop.permute.xlu0 %686
    %v689 = vmul.f32 %v687, %v499
    %v690 = vmul.f32 %v687, %v558
    %693 = vrot.lane.b32.xlu0 %v689, 126
    %v694 = vpop.permute.xlu0 %693
    %695 = vrot.lane.b32.xlu0 %v690, 126
    %v696 = vpop.permute.xlu0 %695
    %v697 = vsel %vm346, %v694, %v696
    %v699 = vadd.f32 %v681, %v697
    %700 = vset.pattern.permute.xlu0 1
    %701 = vperm.xlu0 %700, %v683
    %v702 = vpop.permute.xlu0 %701
    %v704 = vmul.f32 %v702, %v506
    %v705 = vmul.f32 %v702, %v574
    %708 = vrot.lane.b32.xlu0 %v704, 126
    %v709 = vpop.permute.xlu0 %708
    %710 = vrot.lane.b32.xlu0 %v705, 126
    %v711 = vpop.permute.xlu0 %710
    %v712 = vsel %vm346, %v709, %v711
    %v714 = vadd.f32 %v699, %v712
    %715 = vset.pattern.permute.xlu0 2
    %716 = vperm.xlu0 %715, %v683
    %v717 = vpop.permute.xlu0 %716
    %v719 = vmul.f32 %v717, %v513
    %v720 = vmul.f32 %v717, %v590
    %723 = vrot.lane.b32.xlu0 %v719, 126
    %v724 = vpop.permute.xlu0 %723
    %725 = vrot.lane.b32.xlu0 %v720, 126
    %v726 = vpop.permute.xlu0 %725
    %v727 = vsel %vm346, %v724, %v726
    %v729 = vadd.f32 %v714, %v727
    %730 = vset.pattern.permute.xlu0 3
    %731 = vperm.xlu0 %730, %v683
    %v732 = vpop.permute.xlu0 %731
    %v734 = vmul.f32 %v732, %v520
    %v735 = vmul.f32 %v732, %v606
    %738 = vrot.lane.b32.xlu0 %v734, 126
    %v739 = vpop.permute.xlu0 %738
    %740 = vrot.lane.b32.xlu0 %v735, 126
    %v741 = vpop.permute.xlu0 %740
    %v742 = vsel %vm346, %v739, %v741
    %v744 = vadd.f32 %v729, %v742
    %745 = vset.pattern.permute.xlu0 4
    %746 = vperm.xlu0 %745, %v683
    %v747 = vpop.permute.xlu0 %746
    %v749 = vmul.f32 %v747, %v527
    %v750 = vmul.f32 %v747, %v622
    %753 = vrot.lane.b32.xlu0 %v749, 126
    %v754 = vpop.permute.xlu0 %753
    %755 = vrot.lane.b32.xlu0 %v750, 126
    %v756 = vpop.permute.xlu0 %755
    %v757 = vsel %vm346, %v754, %v756
    %v759 = vadd.f32 %v744, %v757
    %760 = vset.pattern.permute.xlu0 5
    %761 = vperm.xlu0 %760, %v683
    %v762 = vpop.permute.xlu0 %761
    %v764 = vmul.f32 %v762, %v534
    %v765 = vmul.f32 %v762, %v638
    %768 = vrot.lane.b32.xlu0 %v764, 126
    %v769 = vpop.permute.xlu0 %768
    %770 = vrot.lane.b32.xlu0 %v765, 126
    %v771 = vpop.permute.xlu0 %770
    %v772 = vsel %vm346, %v769, %v771
    %v774 = vadd.f32 %v759, %v772
    %775 = vset.pattern.permute.xlu0 6
    %776 = vperm.xlu0 %775, %v683
    %v777 = vpop.permute.xlu0 %776
    %v779 = vmul.f32 %v777, %v541
    %v780 = vmul.f32 %v777, %v654
    %783 = vrot.lane.b32.xlu0 %v779, 126
    %v784 = vpop.permute.xlu0 %783
    %785 = vrot.lane.b32.xlu0 %v780, 126
    %v786 = vpop.permute.xlu0 %785
    %v787 = vsel %vm346, %v784, %v786
    %v789 = vadd.f32 %v774, %v787
    %790 = vset.pattern.permute.xlu0 7
    %791 = vperm.xlu0 %790, %v683
    %v792 = vpop.permute.xlu0 %791
    %v794 = vmul.f32 %v792, %v548
    %v795 = vmul.f32 %v792, %v670
    %798 = vrot.lane.b32.xlu0 %v794, 126
    %v799 = vpop.permute.xlu0 %798
    %800 = vrot.lane.b32.xlu0 %v795, 126
    %v801 = vpop.permute.xlu0 %800
    %v802 = vsel %vm346, %v799, %v801
    %v804 = vadd.f32 %v789, %v802
    %v805 = vld [vmem:[%s5] sm:$0xff]
    %807 = vset.pattern.permute.xlu0 0
    %808 = vperm.xlu0 %807, %v805
    %v809 = vpop.permute.xlu0 %808
    %v811 = vadd.f32 %v804, %v809
    %v812 = vmax.f32 %v811, 0.0
    %v813 = vadd.f32 %v58, %v812
    %814 = vst [vmem:[#allocation5] sm:$0xff] %v813
    %s815 = scalar_lea.vmem [#allocation2], 8
    %v816 = vld [vmem:[%s815] sm:$0xff]
    %v817 = vsel %vm56, %v816, 0.0
    %s818 = scalar_lea.vmem %s1, 16
    %v819 = vld [vmem:[%s818] sm:$0xff]
    %v820 = vld [vmem:[%s818 + $0x8] sm:$0xff]
    %v821 = vld [vmem:[%s2] sm:$0xff]
    %823 = vset.pattern.permute.xlu0 0
    %824 = vperm.xlu0 %823, %v821
    %v825 = vpop.permute.xlu0 %824
    %v827 = vperm.slane %v819, 0
    %v828 = vperm.slane %v817, 0
    %v829 = vmul.f32 %v825, %v827
    %v830 = vmul.f32 %v825, %v828
    %v831 = vadd.f32 %v829, 0.0
    %v832 = vadd.f32 %v830, 0.0
    %833 = vset.pattern.permute.xlu0 1
    %834 = vperm.xlu0 %833, %v821
    %v835 = vpop.permute.xlu0 %834
    %v837 = vperm.slane %v819, 1
    %v838 = vperm.slane %v817, 1
    %v839 = vmul.f32 %v835, %v837
    %v840 = vmul.f32 %v835, %v838
    %v841 = vadd.f32 %v831, %v839
    %v842 = vadd.f32 %v832, %v840
    %843 = vset.pattern.permute.xlu0 2
    %844 = vperm.xlu0 %843, %v821
    %v845 = vpop.permute.xlu0 %844
    %v847 = vperm.slane %v819, 2
    %v848 = vperm.slane %v817, 2
    %v849 = vmul.f32 %v845, %v847
    %v850 = vmul.f32 %v845, %v848
    %v851 = vadd.f32 %v841, %v849
    %v852 = vadd.f32 %v842, %v850
    %853 = vset.pattern.permute.xlu0 3
    %854 = vperm.xlu0 %853, %v821
    %v855 = vpop.permute.xlu0 %854
    %v857 = vperm.slane %v819, 3
    %v858 = vperm.slane %v817, 3
    %v859 = vmul.f32 %v855, %v857
    %v860 = vmul.f32 %v855, %v858
    %v861 = vadd.f32 %v851, %v859
    %v862 = vadd.f32 %v852, %v860
    %863 = vset.pattern.permute.xlu0 4
    %864 = vperm.xlu0 %863, %v821
    %v865 = vpop.permute.xlu0 %864
    %v867 = vperm.slane %v819, 4
    %v868 = vperm.slane %v817, 4
    %v869 = vmul.f32 %v865, %v867
    %v870 = vmul.f32 %v865, %v868
    %v871 = vadd.f32 %v861, %v869
    %v872 = vadd.f32 %v862, %v870
    %873 = vset.pattern.permute.xlu0 5
    %874 = vperm.xlu0 %873, %v821
    %v875 = vpop.permute.xlu0 %874
    %v877 = vperm.slane %v819, 5
    %v878 = vperm.slane %v817, 5
    %v879 = vmul.f32 %v875, %v877
    %v880 = vmul.f32 %v875, %v878
    %v881 = vadd.f32 %v871, %v879
    %v882 = vadd.f32 %v872, %v880
    %883 = vset.pattern.permute.xlu0 6
    %884 = vperm.xlu0 %883, %v821
    %v885 = vpop.permute.xlu0 %884
    %v887 = vperm.slane %v819, 6
    %v888 = vperm.slane %v817, 6
    %v889 = vmul.f32 %v885, %v887
    %v890 = vmul.f32 %v885, %v888
    %v891 = vadd.f32 %v881, %v889
    %v892 = vadd.f32 %v882, %v890
    %893 = vset.pattern.permute.xlu0 7
    %894 = vperm.xlu0 %893, %v821
    %v895 = vpop.permute.xlu0 %894
    %v897 = vperm.slane %v819, 7
    %v898 = vperm.slane %v817, 7
    %v899 = vmul.f32 %v895, %v897
    %v900 = vmul.f32 %v895, %v898
    %v901 = vadd.f32 %v891, %v899
    %v902 = vadd.f32 %v892, %v900
    %v903 = vld [vmem:[%s143] sm:$0xff]
    %905 = vset.pattern.permute.xlu0 0
    %906 = vperm.xlu0 %905, %v903
    %v907 = vpop.permute.xlu0 %906
    %v909 = vperm.slane %v820, 0
    %v910 = vmul.f32 %v907, %v827
    %v911 = vmul.f32 %v907, %v828
    %v912 = vmul.f32 %v907, %v909
    %916 = vrot.lane.b32.xlu0 %v910, 127
    %v917 = vpop.permute.xlu0 %916
    %918 = vrot.lane.b32.xlu0 %v911, 127
    %v919 = vpop.permute.xlu0 %918
    %920 = vrot.lane.b32.xlu0 %v912, 127
    %v921 = vpop.permute.xlu0 %920
    %v922 = vsel %vm163, %v917, %v919
    %v923 = vsel %vm163, %v919, %v921
    %v926 = vadd.f32 %v901, %v922
    %v927 = vadd.f32 %v902, %v923
    %928 = vset.pattern.permute.xlu0 1
    %929 = vperm.xlu0 %928, %v903
    %v930 = vpop.permute.xlu0 %929
    %v932 = vperm.slane %v820, 1
    %v933 = vmul.f32 %v930, %v837
    %v934 = vmul.f32 %v930, %v838
    %v935 = vmul.f32 %v930, %v932
    %939 = vrot.lane.b32.xlu0 %v933, 127
    %v940 = vpop.permute.xlu0 %939
    %941 = vrot.lane.b32.xlu0 %v934, 127
    %v942 = vpop.permute.xlu0 %941
    %943 = vrot.lane.b32.xlu0 %v935, 127
    %v944 = vpop.permute.xlu0 %943
    %v945 = vsel %vm163, %v940, %v942
    %v946 = vsel %vm163, %v942, %v944
    %v949 = vadd.f32 %v926, %v945
    %v950 = vadd.f32 %v927, %v946
    %951 = vset.pattern.permute.xlu0 2
    %952 = vperm.xlu0 %951, %v903
    %v953 = vpop.permute.xlu0 %952
    %v955 = vperm.slane %v820, 2
    %v956 = vmul.f32 %v953, %v847
    %v957 = vmul.f32 %v953, %v848
    %v958 = vmul.f32 %v953, %v955
    %962 = vrot.lane.b32.xlu0 %v956, 127
    %v963 = vpop.permute.xlu0 %962
    %964 = vrot.lane.b32.xlu0 %v957, 127
    %v965 = vpop.permute.xlu0 %964
    %966 = vrot.lane.b32.xlu0 %v958, 127
    %v967 = vpop.permute.xlu0 %966
    %v968 = vsel %vm163, %v963, %v965
    %v969 = vsel %vm163, %v965, %v967
    %v972 = vadd.f32 %v949, %v968
    %v973 = vadd.f32 %v950, %v969
    %974 = vset.pattern.permute.xlu0 3
    %975 = vperm.xlu0 %974, %v903
    %v976 = vpop.permute.xlu0 %975
    %v978 = vperm.slane %v820, 3
    %v979 = vmul.f32 %v976, %v857
    %v980 = vmul.f32 %v976, %v858
    %v981 = vmul.f32 %v976, %v978
    %985 = vrot.lane.b32.xlu0 %v979, 127
    %v986 = vpop.permute.xlu0 %985
    %987 = vrot.lane.b32.xlu0 %v980, 127
    %v988 = vpop.permute.xlu0 %987
    %989 = vrot.lane.b32.xlu0 %v981, 127
    %v990 = vpop.permute.xlu0 %989
    %v991 = vsel %vm163, %v986, %v988
    %v992 = vsel %vm163, %v988, %v990
    %v995 = vadd.f32 %v972, %v991
    %v996 = vadd.f32 %v973, %v992
    %997 = vset.pattern.permute.xlu0 4
    %998 = vperm.xlu0 %997, %v903
    %v999 = vpop.permute.xlu0 %998
    %v1001 = vperm.slane %v820, 4
    %v1002 = vmul.f32 %v999, %v867
    %v1003 = vmul.f32 %v999, %v868
    %v1004 = vmul.f32 %v999, %v1001
    %1008 = vrot.lane.b32.xlu0 %v1002, 127
    %v1009 = vpop.permute.xlu0 %1008
    %1010 = vrot.lane.b32.xlu0 %v1003, 127
    %v1011 = vpop.permute.xlu0 %1010
    %1012 = vrot.lane.b32.xlu0 %v1004, 127
    %v1013 = vpop.permute.xlu0 %1012
    %v1014 = vsel %vm163, %v1009, %v1011
    %v1015 = vsel %vm163, %v1011, %v1013
    %v1018 = vadd.f32 %v995, %v1014
    %v1019 = vadd.f32 %v996, %v1015
    %1020 = vset.pattern.permute.xlu0 5
    %1021 = vperm.xlu0 %1020, %v903
    %v1022 = vpop.permute.xlu0 %1021
    %v1024 = vperm.slane %v820, 5
    %v1025 = vmul.f32 %v1022, %v877
    %v1026 = vmul.f32 %v1022, %v878
    %v1027 = vmul.f32 %v1022, %v1024
    %1031 = vrot.lane.b32.xlu0 %v1025, 127
    %v1032 = vpop.permute.xlu0 %1031
    %1033 = vrot.lane.b32.xlu0 %v1026, 127
    %v1034 = vpop.permute.xlu0 %1033
    %1035 = vrot.lane.b32.xlu0 %v1027, 127
    %v1036 = vpop.permute.xlu0 %1035
    %v1037 = vsel %vm163, %v1032, %v1034
    %v1038 = vsel %vm163, %v1034, %v1036
    %v1041 = vadd.f32 %v1018, %v1037
    %v1042 = vadd.f32 %v1019, %v1038
    %1043 = vset.pattern.permute.xlu0 6
    %1044 = vperm.xlu0 %1043, %v903
    %v1045 = vpop.permute.xlu0 %1044
    %v1047 = vperm.slane %v820, 6
    %v1048 = vmul.f32 %v1045, %v887
    %v1049 = vmul.f32 %v1045, %v888
    %v1050 = vmul.f32 %v1045, %v1047
    %1054 = vrot.lane.b32.xlu0 %v1048, 127
    %v1055 = vpop.permute.xlu0 %1054
    %1056 = vrot.lane.b32.xlu0 %v1049, 127
    %v1057 = vpop.permute.xlu0 %1056
    %1058 = vrot.lane.b32.xlu0 %v1050, 127
    %v1059 = vpop.permute.xlu0 %1058
    %v1060 = vsel %vm163, %v1055, %v1057
    %v1061 = vsel %vm163, %v1057, %v1059
    %v1064 = vadd.f32 %v1041, %v1060
    %v1065 = vadd.f32 %v1042, %v1061
    %1066 = vset.pattern.permute.xlu0 7
    %1067 = vperm.xlu0 %1066, %v903
    %v1068 = vpop.permute.xlu0 %1067
    %v1070 = vperm.slane %v820, 7
    %v1071 = vmul.f32 %v1068, %v897
    %v1072 = vmul.f32 %v1068, %v898
    %v1073 = vmul.f32 %v1068, %v1070
    %1077 = vrot.lane.b32.xlu0 %v1071, 127
    %v1078 = vpop.permute.xlu0 %1077
    %1079 = vrot.lane.b32.xlu0 %v1072, 127
    %v1080 = vpop.permute.xlu0 %1079
    %1081 = vrot.lane.b32.xlu0 %v1073, 127
    %v1082 = vpop.permute.xlu0 %1081
    %v1083 = vsel %vm163, %v1078, %v1080
    %v1084 = vsel %vm163, %v1080, %v1082
    %v1087 = vadd.f32 %v1064, %v1083
    %v1088 = vadd.f32 %v1065, %v1084
    %v1089 = vld [vmem:[%s331] sm:$0xff]
    %1091 = vset.pattern.permute.xlu0 0
    %1092 = vperm.xlu0 %1091, %v1089
    %v1093 = vpop.permute.xlu0 %1092
    %v1095 = vmul.f32 %v1093, %v828
    %v1096 = vmul.f32 %v1093, %v909
    %1099 = vrot.lane.b32.xlu0 %v1095, 126
    %v1100 = vpop.permute.xlu0 %1099
    %1101 = vrot.lane.b32.xlu0 %v1096, 126
    %v1102 = vpop.permute.xlu0 %1101
    %v1103 = vsel %vm346, %v1100, %v1102
    %v1106 = vadd.f32 %v1087, %v1100
    %v1107 = vadd.f32 %v1088, %v1103
    %1108 = vset.pattern.permute.xlu0 1
    %1109 = vperm.xlu0 %1108, %v1089
    %v1110 = vpop.permute.xlu0 %1109
    %v1112 = vmul.f32 %v1110, %v838
    %v1113 = vmul.f32 %v1110, %v932
    %1116 = vrot.lane.b32.xlu0 %v1112, 126
    %v1117 = vpop.permute.xlu0 %1116
    %1118 = vrot.lane.b32.xlu0 %v1113, 126
    %v1119 = vpop.permute.xlu0 %1118
    %v1120 = vsel %vm346, %v1117, %v1119
    %v1123 = vadd.f32 %v1106, %v1117
    %v1124 = vadd.f32 %v1107, %v1120
    %1125 = vset.pattern.permute.xlu0 2
    %1126 = vperm.xlu0 %1125, %v1089
    %v1127 = vpop.permute.xlu0 %1126
    %v1129 = vmul.f32 %v1127, %v848
    %v1130 = vmul.f32 %v1127, %v955
    %1133 = vrot.lane.b32.xlu0 %v1129, 126
    %v1134 = vpop.permute.xlu0 %1133
    %1135 = vrot.lane.b32.xlu0 %v1130, 126
    %v1136 = vpop.permute.xlu0 %1135
    %v1137 = vsel %vm346, %v1134, %v1136
    %v1140 = vadd.f32 %v1123, %v1134
    %v1141 = vadd.f32 %v1124, %v1137
    %1142 = vset.pattern.permute.xlu0 3
    %1143 = vperm.xlu0 %1142, %v1089
    %v1144 = vpop.permute.xlu0 %1143
    %v1146 = vmul.f32 %v1144, %v858
    %v1147 = vmul.f32 %v1144, %v978
    %1150 = vrot.lane.b32.xlu0 %v1146, 126
    %v1151 = vpop.permute.xlu0 %1150
    %1152 = vrot.lane.b32.xlu0 %v1147, 126
    %v1153 = vpop.permute.xlu0 %1152
    %v1154 = vsel %vm346, %v1151, %v1153
    %v1157 = vadd.f32 %v1140, %v1151
    %v1158 = vadd.f32 %v1141, %v1154
    %1159 = vset.pattern.permute.xlu0 4
    %1160 = vperm.xlu0 %1159, %v1089
    %v1161 = vpop.permute.xlu0 %1160
    %v1163 = vmul.f32 %v1161, %v868
    %v1164 = vmul.f32 %v1161, %v1001
    %1167 = vrot.lane.b32.xlu0 %v1163, 126
    %v1168 = vpop.permute.xlu0 %1167
    %1169 = vrot.lane.b32.xlu0 %v1164, 126
    %v1170 = vpop.permute.xlu0 %1169
    %v1171 = vsel %vm346, %v1168, %v1170
    %v1174 = vadd.f32 %v1157, %v1168
    %v1175 = vadd.f32 %v1158, %v1171
    %1176 = vset.pattern.permute.xlu0 5
    %1177 = vperm.xlu0 %1176, %v1089
    %v1178 = vpop.permute.xlu0 %1177
    %v1180 = vmul.f32 %v1178, %v878
    %v1181 = vmul.f32 %v1178, %v1024
    %1184 = vrot.lane.b32.xlu0 %v1180, 126
    %v1185 = vpop.permute.xlu0 %1184
    %1186 = vrot.lane.b32.xlu0 %v1181, 126
    %v1187 = vpop.permute.xlu0 %1186
    %v1188 = vsel %vm346, %v1185, %v1187
    %v1191 = vadd.f32 %v1174, %v1185
    %v1192 = vadd.f32 %v1175, %v1188
    %1193 = vset.pattern.permute.xlu0 6
    %1194 = vperm.xlu0 %1193, %v1089
    %v1195 = vpop.permute.xlu0 %1194
    %v1197 = vmul.f32 %v1195, %v888
    %v1198 = vmul.f32 %v1195, %v1047
    %1201 = vrot.lane.b32.xlu0 %v1197, 126
    %v1202 = vpop.permute.xlu0 %1201
    %1203 = vrot.lane.b32.xlu0 %v1198, 126
    %v1204 = vpop.permute.xlu0 %1203
    %v1205 = vsel %vm346, %v1202, %v1204
    %v1208 = vadd.f32 %v1191, %v1202
    %v1209 = vadd.f32 %v1192, %v1205
    %1210 = vset.pattern.permute.xlu0 7
    %1211 = vperm.xlu0 %1210, %v1089
    %v1212 = vpop.permute.xlu0 %1211
    %v1214 = vmul.f32 %v1212, %v898
    %v1215 = vmul.f32 %v1212, %v1070
    %1218 = vrot.lane.b32.xlu0 %v1214, 126
    %v1219 = vpop.permute.xlu0 %1218
    %1220 = vrot.lane.b32.xlu0 %v1215, 126
    %v1221 = vpop.permute.xlu0 %1220
    %v1222 = vsel %vm346, %v1219, %v1221
    %v1225 = vadd.f32 %v1208, %v1219
    %v1226 = vadd.f32 %v1209, %v1222
    %v1227 = vld [vmem:[%s3] sm:$0xff]
    %1229 = vset.pattern.permute.xlu0 0
    %1230 = vperm.xlu0 %1229, %v1227
    %v1231 = vpop.permute.xlu0 %1230
    %v1233 = vadd.f32 %v1225, %v1231
    %v1234 = vadd.f32 %v1226, %v1231
    %v1235 = vmax.f32 %v1233, 0.0
    %v1236 = vmax.f32 %v1234, 0.0
    %1239 = vrot.lane.b32.xlu0 %v1235, 2
    %v1240 = vpop.permute.xlu0 %1239
    %1241 = vrot.lane.b32.xlu0 %v1236, 2
    %v1242 = vpop.permute.xlu0 %1241
    %v1243 = vsel %vm487, %v1240, %v1242
    %v1246 = vsel %vm52, %v1243, 0.0
    %v1247 = vsel %vm53, %v1242, 0.0
    %v1248 = vld [vmem:[%s4] sm:$0xff]
    %1250 = vset.pattern.permute.xlu0 0
    %1251 = vperm.xlu0 %1250, %v1248
    %v1252 = vpop.permute.xlu0 %1251
    %v1254 = vperm.slane %v1246, 0
    %v1255 = vmul.f32 %v1252, %v1254
    %v1256 = vadd.f32 %v1255, 0.0
    %1257 = vset.pattern.permute.xlu0 1
    %1258 = vperm.xlu0 %1257, %v1248
    %v1259 = vpop.permute.xlu0 %1258
    %v1261 = vperm.slane %v1246, 1
    %v1262 = vmul.f32 %v1259, %v1261
    %v1263 = vadd.f32 %v1256, %v1262
    %1264 = vset.pattern.permute.xlu0 2
    %1265 = vperm.xlu0 %1264, %v1248
    %v1266 = vpop.permute.xlu0 %1265
    %v1268 = vperm.slane %v1246, 2
    %v1269 = vmul.f32 %v1266, %v1268
    %v1270 = vadd.f32 %v1263, %v1269
    %1271 = vset.pattern.permute.xlu0 3
    %1272 = vperm.xlu0 %1271, %v1248
    %v1273 = vpop.permute.xlu0 %1272
    %v1275 = vperm.slane %v1246, 3
    %v1276 = vmul.f32 %v1273, %v1275
    %v1277 = vadd.f32 %v1270, %v1276
    %1278 = vset.pattern.permute.xlu0 4
    %1279 = vperm.xlu0 %1278, %v1248
    %v1280 = vpop.permute.xlu0 %1279
    %v1282 = vperm.slane %v1246, 4
    %v1283 = vmul.f32 %v1280, %v1282
    %v1284 = vadd.f32 %v1277, %v1283
    %1285 = vset.pattern.permute.xlu0 5
    %1286 = vperm.xlu0 %1285, %v1248
    %v1287 = vpop.permute.xlu0 %1286
    %v1289 = vperm.slane %v1246, 5
    %v1290 = vmul.f32 %v1287, %v1289
    %v1291 = vadd.f32 %v1284, %v1290
    %1292 = vset.pattern.permute.xlu0 6
    %1293 = vperm.xlu0 %1292, %v1248
    %v1294 = vpop.permute.xlu0 %1293
    %v1296 = vperm.slane %v1246, 6
    %v1297 = vmul.f32 %v1294, %v1296
    %v1298 = vadd.f32 %v1291, %v1297
    %1299 = vset.pattern.permute.xlu0 7
    %1300 = vperm.xlu0 %1299, %v1248
    %v1301 = vpop.permute.xlu0 %1300
    %v1303 = vperm.slane %v1246, 7
    %v1304 = vmul.f32 %v1301, %v1303
    %v1305 = vadd.f32 %v1298, %v1304
    %v1306 = vld [vmem:[%s551] sm:$0xff]
    %1308 = vset.pattern.permute.xlu0 0
    %1309 = vperm.xlu0 %1308, %v1306
    %v1310 = vpop.permute.xlu0 %1309
    %v1312 = vperm.slane %v1247, 0
    %v1313 = vmul.f32 %v1310, %v1254
    %v1314 = vmul.f32 %v1310, %v1312
    %1317 = vrot.lane.b32.xlu0 %v1313, 127
    %v1318 = vpop.permute.xlu0 %1317
    %1319 = vrot.lane.b32.xlu0 %v1314, 127
    %v1320 = vpop.permute.xlu0 %1319
    %v1321 = vsel %vm163, %v1318, %v1320
    %v1323 = vadd.f32 %v1305, %v1321
    %1324 = vset.pattern.permute.xlu0 1
    %1325 = vperm.xlu0 %1324, %v1306
    %v1326 = vpop.permute.xlu0 %1325
    %v1328 = vperm.slane %v1247, 1
    %v1329 = vmul.f32 %v1326, %v1261
    %v1330 = vmul.f32 %v1326, %v1328
    %1333 = vrot.lane.b32.xlu0 %v1329, 127
    %v1334 = vpop.permute.xlu0 %1333
    %1335 = vrot.lane.b32.xlu0 %v1330, 127
    %v1336 = vpop.permute.xlu0 %1335
    %v1337 = vsel %vm163, %v1334, %v1336
    %v1339 = vadd.f32 %v1323, %v1337
    %1340 = vset.pattern.permute.xlu0 2
    %1341 = vperm.xlu0 %1340, %v1306
    %v1342 = vpop.permute.xlu0 %1341
    %v1344 = vperm.slane %v1247, 2
    %v1345 = vmul.f32 %v1342, %v1268
    %v1346 = vmul.f32 %v1342, %v1344
    %1349 = vrot.lane.b32.xlu0 %v1345, 127
    %v1350 = vpop.permute.xlu0 %1349
    %1351 = vrot.lane.b32.xlu0 %v1346, 127
    %v1352 = vpop.permute.xlu0 %1351
    %v1353 = vsel %vm163, %v1350, %v1352
    %v1355 = vadd.f32 %v1339, %v1353
    %1356 = vset.pattern.permute.xlu0 3
    %1357 = vperm.xlu0 %1356, %v1306
    %v1358 = vpop.permute.xlu0 %1357
    %v1360 = vperm.slane %v1247, 3
    %v1361 = vmul.f32 %v1358, %v1275
    %v1362 = vmul.f32 %v1358, %v1360
    %1365 = vrot.lane.b32.xlu0 %v1361, 127
    %v1366 = vpop.permute.xlu0 %1365
    %1367 = vrot.lane.b32.xlu0 %v1362, 127
    %v1368 = vpop.permute.xlu0 %1367
    %v1369 = vsel %vm163, %v1366, %v1368
    %v1371 = vadd.f32 %v1355, %v1369
    %1372 = vset.pattern.permute.xlu0 4
    %1373 = vperm.xlu0 %1372, %v1306
    %v1374 = vpop.permute.xlu0 %1373
    %v1376 = vperm.slane %v1247, 4
    %v1377 = vmul.f32 %v1374, %v1282
    %v1378 = vmul.f32 %v1374, %v1376
    %1381 = vrot.lane.b32.xlu0 %v1377, 127
    %v1382 = vpop.permute.xlu0 %1381
    %1383 = vrot.lane.b32.xlu0 %v1378, 127
    %v1384 = vpop.permute.xlu0 %1383
    %v1385 = vsel %vm163, %v1382, %v1384
    %v1387 = vadd.f32 %v1371, %v1385
    %1388 = vset.pattern.permute.xlu0 5
    %1389 = vperm.xlu0 %1388, %v1306
    %v1390 = vpop.permute.xlu0 %1389
    %v1392 = vperm.slane %v1247, 5
    %v1393 = vmul.f32 %v1390, %v1289
    %v1394 = vmul.f32 %v1390, %v1392
    %1397 = vrot.lane.b32.xlu0 %v1393, 127
    %v1398 = vpop.permute.xlu0 %1397
    %1399 = vrot.lane.b32.xlu0 %v1394, 127
    %v1400 = vpop.permute.xlu0 %1399
    %v1401 = vsel %vm163, %v1398, %v1400
    %v1403 = vadd.f32 %v1387, %v1401
    %1404 = vset.pattern.permute.xlu0 6
    %1405 = vperm.xlu0 %1404, %v1306
    %v1406 = vpop.permute.xlu0 %1405
    %v1408 = vperm.slane %v1247, 6
    %v1409 = vmul.f32 %v1406, %v1296
    %v1410 = vmul.f32 %v1406, %v1408
    %1413 = vrot.lane.b32.xlu0 %v1409, 127
    %v1414 = vpop.permute.xlu0 %1413
    %1415 = vrot.lane.b32.xlu0 %v1410, 127
    %v1416 = vpop.permute.xlu0 %1415
    %v1417 = vsel %vm163, %v1414, %v1416
    %v1419 = vadd.f32 %v1403, %v1417
    %1420 = vset.pattern.permute.xlu0 7
    %1421 = vperm.xlu0 %1420, %v1306
    %v1422 = vpop.permute.xlu0 %1421
    %v1424 = vperm.slane %v1247, 7
    %v1425 = vmul.f32 %v1422, %v1303
    %v1426 = vmul.f32 %v1422, %v1424
    %1429 = vrot.lane.b32.xlu0 %v1425, 127
    %v1430 = vpop.permute.xlu0 %1429
    %1431 = vrot.lane.b32.xlu0 %v1426, 127
    %v1432 = vpop.permute.xlu0 %1431
    %v1433 = vsel %vm163, %v1430, %v1432
    %v1435 = vadd.f32 %v1419, %v1433
    %v1436 = vld [vmem:[%s682] sm:$0xff]
    %1438 = vset.pattern.permute.xlu0 0
    %1439 = vperm.xlu0 %1438, %v1436
    %v1440 = vpop.permute.xlu0 %1439
    %v1442 = vmul.f32 %v1440, %v1254
    %v1443 = vmul.f32 %v1440, %v1312
    %1446 = vrot.lane.b32.xlu0 %v1442, 126
    %v1447 = vpop.permute.xlu0 %1446
    %1448 = vrot.lane.b32.xlu0 %v1443, 126
    %v1449 = vpop.permute.xlu0 %1448
    %v1450 = vsel %vm346, %v1447, %v1449
    %v1452 = vadd.f32 %v1435, %v1450
    %1453 = vset.pattern.permute.xlu0 1
    %1454 = vperm.xlu0 %1453, %v1436
    %v1455 = vpop.permute.xlu0 %1454
    %v1457 = vmul.f32 %v1455, %v1261
    %v1458 = vmul.f32 %v1455, %v1328
    %1461 = vrot.lane.b32.xlu0 %v1457, 126
    %v1462 = vpop.permute.xlu0 %1461
    %1463 = vrot.lane.b32.xlu0 %v1458, 126
    %v1464 = vpop.permute.xlu0 %1463
    %v1465 = vsel %vm346, %v1462, %v1464
    %v1467 = vadd.f32 %v1452, %v1465
    %1468 = vset.pattern.permute.xlu0 2
    %1469 = vperm.xlu0 %1468, %v1436
    %v1470 = vpop.permute.xlu0 %1469
    %v1472 = vmul.f32 %v1470, %v1268
    %v1473 = vmul.f32 %v1470, %v1344
    %1476 = vrot.lane.b32.xlu0 %v1472, 126
    %v1477 = vpop.permute.xlu0 %1476
    %1478 = vrot.lane.b32.xlu0 %v1473, 126
    %v1479 = vpop.permute.xlu0 %1478
    %v1480 = vsel %vm346, %v1477, %v1479
    %v1482 = vadd.f32 %v1467, %v1480
    %1483 = vset.pattern.permute.xlu0 3
    %1484 = vperm.xlu0 %1483, %v1436
    %v1485 = vpop.permute.xlu0 %1484
    %v1487 = vmul.f32 %v1485, %v1275
    %v1488 = vmul.f32 %v1485, %v1360
    %1491 = vrot.lane.b32.xlu0 %v1487, 126
    %v1492 = vpop.permute.xlu0 %1491
    %1493 = vrot.lane.b32.xlu0 %v1488, 126
    %v1494 = vpop.permute.xlu0 %1493
    %v1495 = vsel %vm346, %v1492, %v1494
    %v1497 = vadd.f32 %v1482, %v1495
    %1498 = vset.pattern.permute.xlu0 4
    %1499 = vperm.xlu0 %1498, %v1436
    %v1500 = vpop.permute.xlu0 %1499
    %v1502 = vmul.f32 %v1500, %v1282
    %v1503 = vmul.f32 %v1500, %v1376
    %1506 = vrot.lane.b32.xlu0 %v1502, 126
    %v1507 = vpop.permute.xlu0 %1506
    %1508 = vrot.lane.b32.xlu0 %v1503, 126
    %v1509 = vpop.permute.xlu0 %1508
    %v1510 = vsel %vm346, %v1507, %v1509
    %v1512 = vadd.f32 %v1497, %v1510
    %1513 = vset.pattern.permute.xlu0 5
    %1514 = vperm.xlu0 %1513, %v1436
    %v1515 = vpop.permute.xlu0 %1514
    %v1517 = vmul.f32 %v1515, %v1289
    %v1518 = vmul.f32 %v1515, %v1392
    %1521 = vrot.lane.b32.xlu0 %v1517, 126
    %v1522 = vpop.permute.xlu0 %1521
    %1523 = vrot.lane.b32.xlu0 %v1518, 126
    %v1524 = vpop.permute.xlu0 %1523
    %v1525 = vsel %vm346, %v1522, %v1524
    %v1527 = vadd.f32 %v1512, %v1525
    %1528 = vset.pattern.permute.xlu0 6
    %1529 = vperm.xlu0 %1528, %v1436
    %v1530 = vpop.permute.xlu0 %1529
    %v1532 = vmul.f32 %v1530, %v1296
    %v1533 = vmul.f32 %v1530, %v1408
    %1536 = vrot.lane.b32.xlu0 %v1532, 126
    %v1537 = vpop.permute.xlu0 %1536
    %1538 = vrot.lane.b32.xlu0 %v1533, 126
    %v1539 = vpop.permute.xlu0 %1538
    %v1540 = vsel %vm346, %v1537, %v1539
    %v1542 = vadd.f32 %v1527, %v1540
    %1543 = vset.pattern.permute.xlu0 7
    %1544 = vperm.xlu0 %1543, %v1436
    %v1545 = vpop.permute.xlu0 %1544
    %v1547 = vmul.f32 %v1545, %v1303
    %v1548 = vmul.f32 %v1545, %v1424
    %1551 = vrot.lane.b32.xlu0 %v1547, 126
    %v1552 = vpop.permute.xlu0 %1551
    %1553 = vrot.lane.b32.xlu0 %v1548, 126
    %v1554 = vpop.permute.xlu0 %1553
    %v1555 = vsel %vm346, %v1552, %v1554
    %v1557 = vadd.f32 %v1542, %v1555
    %v1558 = vld [vmem:[%s5] sm:$0xff]
    %1560 = vset.pattern.permute.xlu0 0
    %1561 = vperm.xlu0 %1560, %v1558
    %v1562 = vpop.permute.xlu0 %1561
    %v1564 = vadd.f32 %v1557, %v1562
    %v1565 = vmax.f32 %v1564, 0.0
    %v1566 = vadd.f32 %v817, %v1565
    %s1567 = scalar_lea.vmem [#allocation5], 8
    %1568 = vst [vmem:[%s1567] sm:$0xff] %v1566
    // Predicated region
    $region30: #{temporal_block.1} parent=1 // pred_check
      _
    $region31: #{temporal_block.1} parent=1 // pred_check_branch
      %1570 = sbr.rel (0) target = $region33
    $region32: #{temporal_block.1} parent=1 // pred_region
      %1572 = vsyncadd [#allocation4], 0
      %s1573 = sshll.u32 [#allocation5], 4
      %s1574 = int_to_ptr.vmem [resolvable:$true] %s1573
      %s1575 = sshll.u32 %s6, 4
      %s1576 = int_to_ptr.hbm [resolvable:$true] %s1575
      %1581 = dma.vmem_to_hbm [thread:$0]  %s1574, 256, %s1576, [#allocation4], 128, 128, 8
    $region33: #{temporal_block.1} parent=1 // pred_fallthru
      _
    // Predicated region
    $region34: #{temporal_block.1} parent=1 // pred_check
      _
    $region35: #{temporal_block.1} parent=1 // pred_check_branch
      %1583 = sbr.rel (0) target = $region37
    $region36: #{temporal_block.1} parent=1 // pred_region
      %1585 = dma.done [#allocation4], 256
    $region37: #{temporal_block.1} parent=1 // pred_fallthru
      _
    %1586 = vsyncpa [#allocation3], 1
    %1587 = vsyncpa [#allocation4], 1

</llo_original>
